<compile_context>
chip_gen: v7x
topology: tpu7x:2x2x1
jax: 0.10.0
libtpu: 0.0.40
codegen_flags: <defaults>
</compile_context>

<pallas_src>
import jax
import jax.numpy as jnp
import numpy as np
from jax import lax
from jax.experimental import pallas as pl
from jax.experimental.pallas import tpu as pltpu

_EPS = 1e-5


# ----------------------------------------------------------------------------- #
# Kernel
# ----------------------------------------------------------------------------- #
def _make_skipblock_kernel(W, has_down):
    def kernel(x_ref,                      # (Cip, L)  L = N*H*W, lane-dense
               m1_ref,                     # (9*Cip, L) pre-broadcast halo mask, dil=1
               mext_ref,                   # (9*Cop [+ Cip], L) halo mask, dil=2 (+ ones)
               wf1_ref, b1_ref,            # conv1 im2col (Cip, 9*Cip) + bias (Cip,1)
               wdm_ref, bd_ref,            # depthwise weights*mask (9, Cip, L) + bias
               wp_ref, bp_ref,             # pointwise 1x1 (Cop, Cip) + bias (Cop,1)
               wext_ref, b3_ref,           # conv3 [+ downsampler] (Cop, 9*Cop[+Cip]) + bias
               out_ref):                   # (Cop, L)
        f32 = jnp.float32
        L = x_ref.shape[1]
        x = x_ref[...]

        def taps(v, dil):
            # 9 lane-rotated copies of v (tap order (ky, kx)); boundary zeros are
            # applied afterwards via the pre-broadcast masks / wdm.
            planes = []
            for ky in range(3):
                for kx in range(3):
                    off = dil * ((ky - 1) * W + (kx - 1))
                    planes.append(v if off == 0
                                  else pltpu.roll(v, shift=(-off) % L, axis=1))
            return planes

        # ---- conv1: 3x3, pad=1 — one im2col MXU matmul; BN folded; ReLU.
        patch1 = jnp.concatenate(taps(x, 1), axis=0) * m1_ref[...]    # (9*Cip, L)
        out1 = jnp.maximum(
            jnp.dot(wf1_ref[...], patch1, preferred_element_type=f32) + b1_ref[...],
            0.0)                                                       # (Cip, L)

        # ---- conv2a: depthwise 3x3, pad=1 — 9 VPU MACs; halo mask folded into wdm.
        p1 = taps(out1, 1)
        acc = wdm_ref[0] * p1[0]
        for t in range(1, 9):
            acc = acc + wdm_ref[t] * p1[t]
        out2 = jnp.maximum(acc + bd_ref[...], 0.0)                     # (Cip, L)

        # ---- conv2b: pointwise 1x1 — one matmul; BN folded; ReLU.
        out3 = jnp.maximum(
            jnp.dot(wp_ref[...], out2, preferred_element_type=f32) + bp_ref[...],
            0.0)                                                       # (Cop, L)

        # ---- conv3: 3x3, dilation=2, pad=2 (+ fused 1x1 downsampler) + skip + ReLU.
        p3 = taps(out3, 2)
        if has_down:
            patch = jnp.concatenate(p3 + [x], axis=0) * mext_ref[...]  # (9*Cop+Cip, L)
            y = jnp.dot(wext_ref[...], patch, preferred_element_type=f32) + b3_ref[...]
        else:
            patch = jnp.concatenate(p3, axis=0) * mext_ref[...]        # (9*Cop, L)
            y = (jnp.dot(wext_ref[...], patch, preferred_element_type=f32)
                 + b3_ref[...] + x)                                     # identity skip
        out_ref[...] = jnp.maximum(y, 0.0).astype(out_ref.dtype)

    return kernel


# ----------------------------------------------------------------------------- #
# Host-side helpers
# ----------------------------------------------------------------------------- #
def _pad8(c):
    return ((c + 7) // 8) * 8


def _tap_mask_rows(H, W, N, dil):
    """(9, N*H*W) float32: 1.0 where tap (ky,kx) reads inside its own image."""
    HW = H * W
    rows = np.zeros((9, N * HW), np.float32)
    t = 0
    for ky in range(3):
        for kx in range(3):
            oy, ox = dil * (ky - 1), dil * (kx - 1)
            m = np.zeros((H, W), np.float32)
            m[max(0, -oy):H - max(0, oy), max(0, -ox):W - max(0, ox)] = 1.0
            rows[t] = np.tile(m.reshape(-1), N)
            t += 1
    return rows


def skipblock_pallas(x_nchw, kparams, *, co):
    """x_nchw: (N, Ci, H, W) f32 -> (N, co, H, W) f32 (NCHW in, NCHW out)."""
    wf1, b1f, wdk, bdf, wpf, bpf, wext, b3f = kparams
    N, Ci, H, W = x_nchw.shape
    Cip = wf1.shape[0]
    Cop = wext.shape[0]
    has_down = wext.shape[1] > 9 * Cop
    HW = H * W
    L = N * HW

    # Pad channels to the 8-sublane tile and fold batch into the lane axis:
    # (N, Ci, H, W) -> (Cip, N*HW), each image contiguous along the lanes.
    x = x_nchw.astype(jnp.float32)
    if Cip > Ci:
        x = jnp.pad(x, ((0, 0), (0, Cip - Ci), (0, 0), (0, 0)))
    xf = jnp.transpose(x.reshape(N, Cip, HW), (1, 0, 2)).reshape(Cip, L)

    # Halo masks: pre-broadcast to full sublane-aligned tiles (numpy constants).
    m1rows = _tap_mask_rows(H, W, N, 1)
    m3rows = _tap_mask_rows(H, W, N, 2)
    M1 = jnp.asarray(np.repeat(m1rows, Cip, axis=0))                  # (9*Cip, L)
    mext_np = np.repeat(m3rows, Cop, axis=0)                          # (9*Cop, L)
    if has_down:
        mext_np = np.concatenate([mext_np, np.ones((Cip, L), np.float32)], axis=0)
    Mext = jnp.asarray(mext_np)
    # Depthwise per-tap weights with the halo mask folded in: (9, Cip, L).
    wdm = wdk[:, :, None] * jnp.asarray(m1rows)[:, None, :]

    args = (xf, M1, Mext, wf1, b1f, wdm, bdf, wpf, bpf, wext, b3f)

    def full_spec(a):
        nd = a.ndim
        return pl.BlockSpec(a.shape, lambda i, _nd=nd: (0,) * _nd)

    out = pl.pallas_call(
        _make_skipblock_kernel(W, has_down),
        out_shape=jax.ShapeDtypeStruct((Cop, L), jnp.float32),
        grid_spec=pltpu.PrefetchScalarGridSpec(
            num_scalar_prefetch=0,
            grid=(1,),
            in_specs=[full_spec(a) for a in args],
            out_specs=pl.BlockSpec((Cop, L), lambda i: (0, 0)),
        ),
        compiler_params=pltpu.CompilerParams(
            dimension_semantics=("arbitrary",)),
    )(*args)

    # (Cop, N*HW) -> (N, co, H, W)
    out = jnp.transpose(out.reshape(Cop, N, HW), (1, 0, 2))[:, :co]
    return out.reshape(N, co, H, W)


def _fold_bn(C):
    # Deterministic, slightly non-trivial eval-mode BN params -> per-channel affine.
    r = jnp.arange(C, dtype=jnp.float32)
    gamma = 1.0 + 0.05 * r
    beta = 0.02 * r
    mean = 0.01 * r
    var = 1.0 + 0.03 * r
    scale = gamma / jnp.sqrt(var + _EPS)
    shift = beta - mean * scale
    return scale, shift


def init_raw_params(key, i, o):
    """PyTorch-layout conv weights + eval-mode BN params (used by the reference)."""
    k1, k2, k3, k4, k5 = jax.random.split(key, 5)
    w1 = jax.random.normal(k1, (i, i, 3, 3), jnp.float32) * 0.2     # (O,I,kh,kw)
    wd = jax.random.normal(k2, (i, 1, 3, 3), jnp.float32) * 0.2     # depthwise
    wp = jax.random.normal(k3, (o, i, 1, 1), jnp.float32) * 0.2     # pointwise
    w3 = jax.random.normal(k4, (o, o, 3, 3), jnp.float32) * 0.2     # dilated
    wdn = jax.random.normal(k5, (o, i, 1, 1), jnp.float32) * 0.2 if i != o else None
    return dict(w1=w1, wd=wd, wp=wp, w3=w3, wdn=wdn,
                bn1=_fold_bn(i), bnd=_fold_bn(i), bnp=_fold_bn(o), bn3=_fold_bn(o))


def prepare_kernel_params(raw):
    """Fold BN into conv weights, pad channels to the 8-sublane tile, flatten 3x3
    kernels to im2col layout, and fuse the 1x1 downsampler into conv3."""
    w1, wd, wp, w3, wdn = raw["w1"], raw["wd"], raw["wp"], raw["w3"], raw["wdn"]
    (s1, b1), (sd, bd), (sp, bp), (s3, b3) = raw["bn1"], raw["bnd"], raw["bnp"], raw["bn3"]
    i = w1.shape[0]
    o = w3.shape[0]
    ip, op = _pad8(i), _pad8(o)

    def padded(a, shape):
        out = jnp.zeros(shape, jnp.float32)
        return out.at[tuple(slice(0, s) for s in a.shape)].set(a)

    # conv1: (O,I,3,3) -> (Cip, 9*Cip), tap-major / cin-minor columns, BN folded.
    w1p = padded(w1 * s1[:, None, None, None], (ip, ip, 3, 3))
    wf1 = jnp.transpose(w1p, (0, 2, 3, 1)).reshape(ip, 9 * ip)
    b1f = padded(b1, (ip,)).reshape(ip, 1)

    # depthwise: (I,1,3,3) -> (9, Cip) per-tap per-channel weights, BN folded.
    wdk = padded(jnp.transpose(wd[:, 0, :, :], (1, 2, 0)).reshape(9, i) * sd[None, :],
                 (9, ip))
    bdf = padded(bd, (ip,)).reshape(ip, 1)

    # pointwise 1x1: (O,I,1,1) -> (Cop, Cip), BN folded.
    wpf = padded(wp[:, :, 0, 0] * sp[:, None], (op, ip))
    bpf = padded(bp, (op,)).reshape(op, 1)

    # dilated conv3 im2col (Cop, 9*Cop), BN folded, with the 1x1 downsampler fused
    # as Cip extra K-columns when i != o.
    w3p = padded(w3 * s3[:, None, None, None], (op, op, 3, 3))
    wf3 = jnp.transpose(w3p, (0, 2, 3, 1)).reshape(op, 9 * op)
    if wdn is not None:
        wdnp = padded(wdn[:, :, 0, 0], (op, ip))
        wext = jnp.concatenate([wf3, wdnp], axis=1)
    else:
        wext = wf3
    b3f = padded(b3, (op,)).reshape(op, 1)
    return (wf1, b1f, wdk, bdf, wpf, bpf, wext, b3f)


def skipblock_ref(x, raw):
    """Pure-JAX (XLA conv) NCHW reference with un-folded weights + explicit BN."""
    i = raw["w1"].shape[0]
    o = raw["w3"].shape[0]
    dn = ("NCHW", "OIHW", "NCHW")

    def bn(y, sb):
        s, b = sb
        return y * s[None, :, None, None] + b[None, :, None, None]

    y = lax.conv_general_dilated(x, raw["w1"], (1, 1), ((1, 1), (1, 1)),
                                 dimension_numbers=dn)
    y = jnp.maximum(bn(y, raw["bn1"]), 0.0)
    y = lax.conv_general_dilated(y, raw["wd"], (1, 1), ((1, 1), (1, 1)),
                                 dimension_numbers=dn, feature_group_count=i)
    y = jnp.maximum(bn(y, raw["bnd"]), 0.0)
    y = lax.conv_general_dilated(y, raw["wp"], (1, 1), "VALID", dimension_numbers=dn)
    y = jnp.maximum(bn(y, raw["bnp"]), 0.0)
    y = lax.conv_general_dilated(y, raw["w3"], (1, 1), ((2, 2), (2, 2)),
                                 rhs_dilation=(2, 2), dimension_numbers=dn)
    y = bn(y, raw["bn3"])
    if i != o:
        idn = lax.conv_general_dilated(x, raw["wdn"], (1, 1), "VALID",
                                       dimension_numbers=dn)
    else:
        idn = x
    return jnp.maximum(y + idn, 0.0)


if __name__ == "__main__":
    key = jax.random.PRNGKey(0)
    N, i, o, H, W = 2, 4, 8, 16, 16          # SkipBlock(i=4, o=8, d=0.1, pm='zeros')
    kx_, kp = jax.random.split(key)
    x = jax.random.normal(kx_, (N, i, H, W), jnp.float32)

    raw = init_raw_params(kp, i, o)
    kparams = prepare_kernel_params(raw)

    fwd = jax.jit(skipblock_pallas, static_argnames=("co",))
    out = jax.block_until_ready(fwd(x, kparams, co=o))
    ref = skipblock_ref(x, raw)

    assert out.shape == (N, o, H, W)
    np.testing.assert_allclose(np.asarray(out), np.asarray(ref), rtol=2e-4, atol=2e-4)
    print("KERNEL_OK")
</pallas_src>

<mosaic_0001>
module attributes {stable_mosaic.version = 11 : i64} {
  func.func @kernel(%arg0: i32, %arg1: memref<8x512xf32, #tpu.memory_space<vmem>>, %arg2: memref<72x512xf32, #tpu.memory_space<vmem>>, %arg3: memref<80x512xf32, #tpu.memory_space<vmem>>, %arg4: memref<8x72xf32, #tpu.memory_space<vmem>>, %arg5: memref<8x1xf32, #tpu.memory_space<vmem>>, %arg6: memref<9x8x512xf32, #tpu.memory_space<vmem>>, %arg7: memref<8x1xf32, #tpu.memory_space<vmem>>, %arg8: memref<8x8xf32, #tpu.memory_space<vmem>>, %arg9: memref<8x1xf32, #tpu.memory_space<vmem>>, %arg10: memref<8x80xf32, #tpu.memory_space<vmem>>, %arg11: memref<8x1xf32, #tpu.memory_space<vmem>>, %arg12: memref<8x512xf32, #tpu.memory_space<vmem>>) attributes {dimension_semantics = [#tpu.dimension_semantics<arbitrary>], iteration_bounds = array<i64: 1>, scalar_prefetch = 0 : i64, scratch_operands = 0 : i64, tpu.core_type = #tpu.core_type<tc>, window_params = [{pipeline_mode = #tpu.pipeline_mode<synchronous>, transform_indices = @transform_0, window_bounds = array<i64: 8, 512>}, {pipeline_mode = #tpu.pipeline_mode<synchronous>, transform_indices = @transform_1, window_bounds = array<i64: 72, 512>}, {pipeline_mode = #tpu.pipeline_mode<synchronous>, transform_indices = @transform_2, window_bounds = array<i64: 80, 512>}, {pipeline_mode = #tpu.pipeline_mode<synchronous>, transform_indices = @transform_3, window_bounds = array<i64: 8, 72>}, {pipeline_mode = #tpu.pipeline_mode<synchronous>, transform_indices = @transform_4, window_bounds = array<i64: 8, 1>}, {pipeline_mode = #tpu.pipeline_mode<synchronous>, transform_indices = @transform_5, window_bounds = array<i64: 9, 8, 512>}, {pipeline_mode = #tpu.pipeline_mode<synchronous>, transform_indices = @transform_6, window_bounds = array<i64: 8, 1>}, {pipeline_mode = #tpu.pipeline_mode<synchronous>, transform_indices = @transform_7, window_bounds = array<i64: 8, 8>}, {pipeline_mode = #tpu.pipeline_mode<synchronous>, transform_indices = @transform_8, window_bounds = array<i64: 8, 1>}, {pipeline_mode = #tpu.pipeline_mode<synchronous>, transform_indices = @transform_9, window_bounds = array<i64: 8, 80>}, {pipeline_mode = #tpu.pipeline_mode<synchronous>, transform_indices = @transform_10, window_bounds = array<i64: 8, 1>}, {pipeline_mode = #tpu.pipeline_mode<synchronous>, transform_indices = @transform_11, window_bounds = array<i64: 8, 512>}]} {
    %c0 = arith.constant 0 : index
    %c0_0 = arith.constant 0 : index
    %0 = vector.load %arg1[%c0, %c0_0] : memref<8x512xf32, #tpu.memory_space<vmem>>, vector<8x512xf32>
    %c17_i32 = arith.constant 17 : i32
    %1 = tpu.dynamic_rotate %0 by %c17_i32 dim 1 : vector<8x512xf32>, i32 -> vector<8x512xf32>
    %c16_i32 = arith.constant 16 : i32
    %2 = tpu.dynamic_rotate %0 by %c16_i32 dim 1 : vector<8x512xf32>, i32 -> vector<8x512xf32>
    %c15_i32 = arith.constant 15 : i32
    %3 = tpu.dynamic_rotate %0 by %c15_i32 dim 1 : vector<8x512xf32>, i32 -> vector<8x512xf32>
    %c1_i32 = arith.constant 1 : i32
    %4 = tpu.dynamic_rotate %0 by %c1_i32 dim 1 : vector<8x512xf32>, i32 -> vector<8x512xf32>
    %c511_i32 = arith.constant 511 : i32
    %5 = tpu.dynamic_rotate %0 by %c511_i32 dim 1 : vector<8x512xf32>, i32 -> vector<8x512xf32>
    %c497_i32 = arith.constant 497 : i32
    %6 = tpu.dynamic_rotate %0 by %c497_i32 dim 1 : vector<8x512xf32>, i32 -> vector<8x512xf32>
    %c496_i32 = arith.constant 496 : i32
    %7 = tpu.dynamic_rotate %0 by %c496_i32 dim 1 : vector<8x512xf32>, i32 -> vector<8x512xf32>
    %c495_i32 = arith.constant 495 : i32
    %8 = tpu.dynamic_rotate %0 by %c495_i32 dim 1 : vector<8x512xf32>, i32 -> vector<8x512xf32>
    %9 = tpu.concatenate %1, %2, %3, %4, %0, %5, %6, %7, %8 in 0 : vector<8x512xf32>, vector<8x512xf32>, vector<8x512xf32>, vector<8x512xf32>, vector<8x512xf32>, vector<8x512xf32>, vector<8x512xf32>, vector<8x512xf32>, vector<8x512xf32> -> vector<72x512xf32>
    %c0_1 = arith.constant 0 : index
    %c0_2 = arith.constant 0 : index
    %10 = vector.load %arg2[%c0_1, %c0_2] : memref<72x512xf32, #tpu.memory_space<vmem>>, vector<72x512xf32>
    %11 = arith.mulf %9, %10 : vector<72x512xf32>
    %c0_3 = arith.constant 0 : index
    %c0_4 = arith.constant 0 : index
    %12 = vector.load %arg4[%c0_3, %c0_4] : memref<8x72xf32, #tpu.memory_space<vmem>>, vector<8x72xf32>
    %cst = arith.constant dense<0.000000e+00> : vector<8x512xf32>
    %13 = tpu.matmul %12, %11, %cst {dimension_numbers = #tpu.dot_dimension_numbers<[1], [0], [0], [1], [0, 0, 1, 1], [], []>} : vector<8x72xf32>, vector<72x512xf32>, vector<8x512xf32> -> vector<8x512xf32>
    %c0_5 = arith.constant 0 : index
    %c0_6 = arith.constant 0 : index
    %14 = vector.load %arg5[%c0_5, %c0_6] : memref<8x1xf32, #tpu.memory_space<vmem>>, vector<8x1xf32>
    %15 = vector.broadcast %14 : vector<8x1xf32> to vector<8x512xf32>
    %16 = arith.addf %13, %15 : vector<8x512xf32>
    %cst_7 = arith.constant 0.000000e+00 : f32
    %17 = vector.broadcast %cst_7 : f32 to vector<8x512xf32>
    %18 = arith.maximumf %16, %17 : vector<8x512xf32>
    %c17_i32_8 = arith.constant 17 : i32
    %19 = tpu.dynamic_rotate %18 by %c17_i32_8 dim 1 : vector<8x512xf32>, i32 -> vector<8x512xf32>
    %c16_i32_9 = arith.constant 16 : i32
    %20 = tpu.dynamic_rotate %18 by %c16_i32_9 dim 1 : vector<8x512xf32>, i32 -> vector<8x512xf32>
    %c15_i32_10 = arith.constant 15 : i32
    %21 = tpu.dynamic_rotate %18 by %c15_i32_10 dim 1 : vector<8x512xf32>, i32 -> vector<8x512xf32>
    %c1_i32_11 = arith.constant 1 : i32
    %22 = tpu.dynamic_rotate %18 by %c1_i32_11 dim 1 : vector<8x512xf32>, i32 -> vector<8x512xf32>
    %c511_i32_12 = arith.constant 511 : i32
    %23 = tpu.dynamic_rotate %18 by %c511_i32_12 dim 1 : vector<8x512xf32>, i32 -> vector<8x512xf32>
    %c497_i32_13 = arith.constant 497 : i32
    %24 = tpu.dynamic_rotate %18 by %c497_i32_13 dim 1 : vector<8x512xf32>, i32 -> vector<8x512xf32>
    %c496_i32_14 = arith.constant 496 : i32
    %25 = tpu.dynamic_rotate %18 by %c496_i32_14 dim 1 : vector<8x512xf32>, i32 -> vector<8x512xf32>
    %c495_i32_15 = arith.constant 495 : i32
    %26 = tpu.dynamic_rotate %18 by %c495_i32_15 dim 1 : vector<8x512xf32>, i32 -> vector<8x512xf32>
    %c0_16 = arith.constant 0 : index
    %c0_17 = arith.constant 0 : index
    %c0_18 = arith.constant 0 : index
    %27 = vector.load %arg6[%c0_16, %c0_17, %c0_18] : memref<9x8x512xf32, #tpu.memory_space<vmem>>, vector<1x8x512xf32>
    %28 = vector.shape_cast %27 : vector<1x8x512xf32> to vector<8x512xf32>
    %29 = arith.mulf %28, %19 : vector<8x512xf32>
    %c1 = arith.constant 1 : index
    %c0_19 = arith.constant 0 : index
    %c0_20 = arith.constant 0 : index
    %30 = vector.load %arg6[%c1, %c0_19, %c0_20] : memref<9x8x512xf32, #tpu.memory_space<vmem>>, vector<1x8x512xf32>
    %31 = vector.shape_cast %30 : vector<1x8x512xf32> to vector<8x512xf32>
    %32 = arith.mulf %31, %20 : vector<8x512xf32>
    %33 = arith.addf %29, %32 : vector<8x512xf32>
    %c2 = arith.constant 2 : index
    %c0_21 = arith.constant 0 : index
    %c0_22 = arith.constant 0 : index
    %34 = vector.load %arg6[%c2, %c0_21, %c0_22] : memref<9x8x512xf32, #tpu.memory_space<vmem>>, vector<1x8x512xf32>
    %35 = vector.shape_cast %34 : vector<1x8x512xf32> to vector<8x512xf32>
    %36 = arith.mulf %35, %21 : vector<8x512xf32>
    %37 = arith.addf %33, %36 : vector<8x512xf32>
    %c3 = arith.constant 3 : index
    %c0_23 = arith.constant 0 : index
    %c0_24 = arith.constant 0 : index
    %38 = vector.load %arg6[%c3, %c0_23, %c0_24] : memref<9x8x512xf32, #tpu.memory_space<vmem>>, vector<1x8x512xf32>
    %39 = vector.shape_cast %38 : vector<1x8x512xf32> to vector<8x512xf32>
    %40 = arith.mulf %39, %22 : vector<8x512xf32>
    %41 = arith.addf %37, %40 : vector<8x512xf32>
    %c4 = arith.constant 4 : index
    %c0_25 = arith.constant 0 : index
    %c0_26 = arith.constant 0 : index
    %42 = vector.load %arg6[%c4, %c0_25, %c0_26] : memref<9x8x512xf32, #tpu.memory_space<vmem>>, vector<1x8x512xf32>
    %43 = vector.shape_cast %42 : vector<1x8x512xf32> to vector<8x512xf32>
    %44 = arith.mulf %43, %18 : vector<8x512xf32>
    %45 = arith.addf %41, %44 : vector<8x512xf32>
    %c5 = arith.constant 5 : index
    %c0_27 = arith.constant 0 : index
    %c0_28 = arith.constant 0 : index
    %46 = vector.load %arg6[%c5, %c0_27, %c0_28] : memref<9x8x512xf32, #tpu.memory_space<vmem>>, vector<1x8x512xf32>
    %47 = vector.shape_cast %46 : vector<1x8x512xf32> to vector<8x512xf32>
    %48 = arith.mulf %47, %23 : vector<8x512xf32>
    %49 = arith.addf %45, %48 : vector<8x512xf32>
    %c6 = arith.constant 6 : index
    %c0_29 = arith.constant 0 : index
    %c0_30 = arith.constant 0 : index
    %50 = vector.load %arg6[%c6, %c0_29, %c0_30] : memref<9x8x512xf32, #tpu.memory_space<vmem>>, vector<1x8x512xf32>
    %51 = vector.shape_cast %50 : vector<1x8x512xf32> to vector<8x512xf32>
    %52 = arith.mulf %51, %24 : vector<8x512xf32>
    %53 = arith.addf %49, %52 : vector<8x512xf32>
    %c7 = arith.constant 7 : index
    %c0_31 = arith.constant 0 : index
    %c0_32 = arith.constant 0 : index
    %54 = vector.load %arg6[%c7, %c0_31, %c0_32] : memref<9x8x512xf32, #tpu.memory_space<vmem>>, vector<1x8x512xf32>
    %55 = vector.shape_cast %54 : vector<1x8x512xf32> to vector<8x512xf32>
    %56 = arith.mulf %55, %25 : vector<8x512xf32>
    %57 = arith.addf %53, %56 : vector<8x512xf32>
    %c8 = arith.constant 8 : index
    %c0_33 = arith.constant 0 : index
    %c0_34 = arith.constant 0 : index
    %58 = vector.load %arg6[%c8, %c0_33, %c0_34] : memref<9x8x512xf32, #tpu.memory_space<vmem>>, vector<1x8x512xf32>
    %59 = vector.shape_cast %58 : vector<1x8x512xf32> to vector<8x512xf32>
    %60 = arith.mulf %59, %26 : vector<8x512xf32>
    %61 = arith.addf %57, %60 : vector<8x512xf32>
    %c0_35 = arith.constant 0 : index
    %c0_36 = arith.constant 0 : index
    %62 = vector.load %arg7[%c0_35, %c0_36] : memref<8x1xf32, #tpu.memory_space<vmem>>, vector<8x1xf32>
    %63 = vector.broadcast %62 : vector<8x1xf32> to vector<8x512xf32>
    %64 = arith.addf %61, %63 : vector<8x512xf32>
    %cst_37 = arith.constant 0.000000e+00 : f32
    %65 = vector.broadcast %cst_37 : f32 to vector<8x512xf32>
    %66 = arith.maximumf %64, %65 : vector<8x512xf32>
    %c0_38 = arith.constant 0 : index
    %c0_39 = arith.constant 0 : index
    %67 = vector.load %arg8[%c0_38, %c0_39] : memref<8x8xf32, #tpu.memory_space<vmem>>, vector<8x8xf32>
    %cst_40 = arith.constant dense<0.000000e+00> : vector<8x512xf32>
    %68 = tpu.matmul %67, %66, %cst_40 {dimension_numbers = #tpu.dot_dimension_numbers<[1], [0], [0], [1], [0, 0, 1, 1], [], []>} : vector<8x8xf32>, vector<8x512xf32>, vector<8x512xf32> -> vector<8x512xf32>
    %c0_41 = arith.constant 0 : index
    %c0_42 = arith.constant 0 : index
    %69 = vector.load %arg9[%c0_41, %c0_42] : memref<8x1xf32, #tpu.memory_space<vmem>>, vector<8x1xf32>
    %70 = vector.broadcast %69 : vector<8x1xf32> to vector<8x512xf32>
    %71 = arith.addf %68, %70 : vector<8x512xf32>
    %cst_43 = arith.constant 0.000000e+00 : f32
    %72 = vector.broadcast %cst_43 : f32 to vector<8x512xf32>
    %73 = arith.maximumf %71, %72 : vector<8x512xf32>
    %c34_i32 = arith.constant 34 : i32
    %74 = tpu.dynamic_rotate %73 by %c34_i32 dim 1 : vector<8x512xf32>, i32 -> vector<8x512xf32>
    %c32_i32 = arith.constant 32 : i32
    %75 = tpu.dynamic_rotate %73 by %c32_i32 dim 1 : vector<8x512xf32>, i32 -> vector<8x512xf32>
    %c30_i32 = arith.constant 30 : i32
    %76 = tpu.dynamic_rotate %73 by %c30_i32 dim 1 : vector<8x512xf32>, i32 -> vector<8x512xf32>
    %c2_i32 = arith.constant 2 : i32
    %77 = tpu.dynamic_rotate %73 by %c2_i32 dim 1 : vector<8x512xf32>, i32 -> vector<8x512xf32>
    %c510_i32 = arith.constant 510 : i32
    %78 = tpu.dynamic_rotate %73 by %c510_i32 dim 1 : vector<8x512xf32>, i32 -> vector<8x512xf32>
    %c482_i32 = arith.constant 482 : i32
    %79 = tpu.dynamic_rotate %73 by %c482_i32 dim 1 : vector<8x512xf32>, i32 -> vector<8x512xf32>
    %c480_i32 = arith.constant 480 : i32
    %80 = tpu.dynamic_rotate %73 by %c480_i32 dim 1 : vector<8x512xf32>, i32 -> vector<8x512xf32>
    %c478_i32 = arith.constant 478 : i32
    %81 = tpu.dynamic_rotate %73 by %c478_i32 dim 1 : vector<8x512xf32>, i32 -> vector<8x512xf32>
    %82 = tpu.concatenate %74, %75, %76, %77, %73, %78, %79, %80, %81, %0 in 0 : vector<8x512xf32>, vector<8x512xf32>, vector<8x512xf32>, vector<8x512xf32>, vector<8x512xf32>, vector<8x512xf32>, vector<8x512xf32>, vector<8x512xf32>, vector<8x512xf32>, vector<8x512xf32> -> vector<80x512xf32>
    %c0_44 = arith.constant 0 : index
    %c0_45 = arith.constant 0 : index
    %83 = vector.load %arg3[%c0_44, %c0_45] : memref<80x512xf32, #tpu.memory_space<vmem>>, vector<80x512xf32>
    %84 = arith.mulf %82, %83 : vector<80x512xf32>
    %c0_46 = arith.constant 0 : index
    %c0_47 = arith.constant 0 : index
    %85 = vector.load %arg10[%c0_46, %c0_47] : memref<8x80xf32, #tpu.memory_space<vmem>>, vector<8x80xf32>
    %cst_48 = arith.constant dense<0.000000e+00> : vector<8x512xf32>
    %86 = tpu.matmul %85, %84, %cst_48 {dimension_numbers = #tpu.dot_dimension_numbers<[1], [0], [0], [1], [0, 0, 1, 1], [], []>} : vector<8x80xf32>, vector<80x512xf32>, vector<8x512xf32> -> vector<8x512xf32>
    %c0_49 = arith.constant 0 : index
    %c0_50 = arith.constant 0 : index
    %87 = vector.load %arg11[%c0_49, %c0_50] : memref<8x1xf32, #tpu.memory_space<vmem>>, vector<8x1xf32>
    %88 = vector.broadcast %87 : vector<8x1xf32> to vector<8x512xf32>
    %89 = arith.addf %86, %88 : vector<8x512xf32>
    %cst_51 = arith.constant 0.000000e+00 : f32
    %90 = vector.broadcast %cst_51 : f32 to vector<8x512xf32>
    %91 = arith.maximumf %89, %90 : vector<8x512xf32>
    %c0_52 = arith.constant 0 : index
    %c0_53 = arith.constant 0 : index
    %92 = vector.load %arg12[%c0_52, %c0_53] : memref<8x512xf32, #tpu.memory_space<vmem>>, vector<8x512xf32>
    tpu.vector_store %arg12[%c0_52, %c0_53], %91 {strides = array<i32>} : memref<8x512xf32, #tpu.memory_space<vmem>>, vector<8x512xf32>,
    return
  }
  func.func @transform_0(%arg0: i32) -> (i32, i32) {
    %c0_i32 = arith.constant 0 : i32
    %c0_i32_0 = arith.constant 0 : i32
    %c0_i32_1 = arith.constant 0 : i32
    return %c0_i32, %c0_i32_0 : i32, i32
  }
  func.func @transform_1(%arg0: i32) -> (i32, i32) {
    %c0_i32 = arith.constant 0 : i32
    %c0_i32_0 = arith.constant 0 : i32
    %c0_i32_1 = arith.constant 0 : i32
    return %c0_i32, %c0_i32_0 : i32, i32
  }
  func.func @transform_2(%arg0: i32) -> (i32, i32) {
    %c0_i32 = arith.constant 0 : i32
    %c0_i32_0 = arith.constant 0 : i32
    %c0_i32_1 = arith.constant 0 : i32
    return %c0_i32, %c0_i32_0 : i32, i32
  }
  func.func @transform_3(%arg0: i32) -> (i32, i32) {
    %c0_i32 = arith.constant 0 : i32
    %c0_i32_0 = arith.constant 0 : i32
    %c0_i32_1 = arith.constant 0 : i32
    return %c0_i32, %c0_i32_0 : i32, i32
  }
  func.func @transform_4(%arg0: i32) -> (i32, i32) {
    %c0_i32 = arith.constant 0 : i32
    %c0_i32_0 = arith.constant 0 : i32
    %c0_i32_1 = arith.constant 0 : i32
    return %c0_i32, %c0_i32_0 : i32, i32
  }
  func.func @transform_5(%arg0: i32) -> (i32, i32, i32) {
    %c0_i32 = arith.constant 0 : i32
    %c0_i32_0 = arith.constant 0 : i32
    %c0_i32_1 = arith.constant 0 : i32
    %c0_i32_2 = arith.constant 0 : i32
    return %c0_i32, %c0_i32_0, %c0_i32_1 : i32, i32, i32
  }
  func.func @transform_6(%arg0: i32) -> (i32, i32) {
    %c0_i32 = arith.constant 0 : i32
    %c0_i32_0 = arith.constant 0 : i32
    %c0_i32_1 = arith.constant 0 : i32
    return %c0_i32, %c0_i32_0 : i32, i32
  }
  func.func @transform_7(%arg0: i32) -> (i32, i32) {
    %c0_i32 = arith.constant 0 : i32
    %c0_i32_0 = arith.constant 0 : i32
    %c0_i32_1 = arith.constant 0 : i32
    return %c0_i32, %c0_i32_0 : i32, i32
  }
  func.func @transform_8(%arg0: i32) -> (i32, i32) {
    %c0_i32 = arith.constant 0 : i32
    %c0_i32_0 = arith.constant 0 : i32
    %c0_i32_1 = arith.constant 0 : i32
    return %c0_i32, %c0_i32_0 : i32, i32
  }
  func.func @transform_9(%arg0: i32) -> (i32, i32) {
    %c0_i32 = arith.constant 0 : i32
    %c0_i32_0 = arith.constant 0 : i32
    %c0_i32_1 = arith.constant 0 : i32
    return %c0_i32, %c0_i32_0 : i32, i32
  }
  func.func @transform_10(%arg0: i32) -> (i32, i32) {
    %c0_i32 = arith.constant 0 : i32
    %c0_i32_0 = arith.constant 0 : i32
    %c0_i32_1 = arith.constant 0 : i32
    return %c0_i32, %c0_i32_0 : i32, i32
  }
  func.func @transform_11(%arg0: i32) -> (i32, i32) {
    %c0_i32 = arith.constant 0 : i32
    %c0_i32_0 = arith.constant 0 : i32
    %c0_i32_1 = arith.constant 0 : i32
    return %c0_i32, %c0_i32_0 : i32, i32
  }
}

</mosaic_0001>

<llo_original>
// kernel: skipblock_pallas.1
$region0: #{skipblock_pallas.1}
  #allocation0 [shape = 'u32[]', space=smem, size = 0x4, offset = 0x4, fixed_abs, tag = 'smem constant byte address 0x4 - core index']
  #allocation1 [shape = 'u32[144,128]{1,0:T(1,128)}', space=vmem, size = 0x12000, scoped, tag = 'internal scratch']
  %s0 = inlined_call_operand.vmem [shape: f32[8,512], index: 0, kind: input, shape index: {}]
  %s1 = inlined_call_operand.vmem [shape: f32[72,512], index: 1, kind: input, shape index: {}]
  %s2 = inlined_call_operand.vmem [shape: f32[80,512], index: 2, kind: input, shape index: {}]
  %s3 = inlined_call_operand.vmem [shape: f32[8,72], index: 3, kind: input, shape index: {}]
  %s4 = inlined_call_operand.vmem [shape: f32[8,1], index: 4, kind: input, shape index: {}]
  %s5 = inlined_call_operand.vmem [shape: f32[9,8,512], index: 5, kind: input, shape index: {}]
  %s6 = inlined_call_operand.vmem [shape: f32[8,1], index: 6, kind: input, shape index: {}]
  %s7 = inlined_call_operand.vmem [shape: f32[8,8], index: 7, kind: input, shape index: {}]
  %s8 = inlined_call_operand.vmem [shape: f32[8,1], index: 8, kind: input, shape index: {}]
  %s9 = inlined_call_operand.vmem [shape: f32[8,80], index: 9, kind: input, shape index: {}]
  %s10 = inlined_call_operand.vmem [shape: f32[8,1], index: 10, kind: input, shape index: {}]
  %s11 = inlined_call_operand.vmem [shape: f32[8,512], index: 11, kind: output, shape index: {}]
  %s12 = sld [smem:[#allocation0]]
  $region54: #{skipblock_pallas.1} parent=0
    _
  %s14 = ssub.s32 1, %s12
  %s15 = scalar_select 0, %s14, %s12
  // Predicated region
  $region2: #{skipblock_pallas.1} parent=0 // pred_check
    _
  $region3: #{skipblock_pallas.1} parent=0 // pred_check_branch
    %17 = sbr.rel (0) target = $region5
  $region4: #{skipblock_pallas.1} parent=0 // pred_region
    _
  $region5: #{skipblock_pallas.1} parent=0 // pred_fallthru
    _
  // Predicated region
  $region6: #{skipblock_pallas.1} parent=0 // pred_check
    _
  $region7: #{skipblock_pallas.1} parent=0 // pred_check_branch
    %19 = sbr.rel (0) target = $region9
  $region8: #{skipblock_pallas.1} parent=0 // pred_region
    _
  $region9: #{skipblock_pallas.1} parent=0 // pred_fallthru
    _
  // Predicated region
  $region10: #{skipblock_pallas.1} parent=0 // pred_check
    _
  $region11: #{skipblock_pallas.1} parent=0 // pred_check_branch
    %21 = sbr.rel (0) target = $region13
  $region12: #{skipblock_pallas.1} parent=0 // pred_region
    _
  $region13: #{skipblock_pallas.1} parent=0 // pred_fallthru
    _
  // Predicated region
  $region14: #{skipblock_pallas.1} parent=0 // pred_check
    _
  $region15: #{skipblock_pallas.1} parent=0 // pred_check_branch
    %23 = sbr.rel (0) target = $region17
  $region16: #{skipblock_pallas.1} parent=0 // pred_region
    _
  $region17: #{skipblock_pallas.1} parent=0 // pred_fallthru
    _
  // Predicated region
  $region18: #{skipblock_pallas.1} parent=0 // pred_check
    _
  $region19: #{skipblock_pallas.1} parent=0 // pred_check_branch
    %25 = sbr.rel (0) target = $region21
  $region20: #{skipblock_pallas.1} parent=0 // pred_region
    _
  $region21: #{skipblock_pallas.1} parent=0 // pred_fallthru
    _
  // Predicated region
  $region22: #{skipblock_pallas.1} parent=0 // pred_check
    _
  $region23: #{skipblock_pallas.1} parent=0 // pred_check_branch
    %27 = sbr.rel (0) target = $region25
  $region24: #{skipblock_pallas.1} parent=0 // pred_region
    _
  $region25: #{skipblock_pallas.1} parent=0 // pred_fallthru
    _
  // Predicated region
  $region26: #{skipblock_pallas.1} parent=0 // pred_check
    _
  $region27: #{skipblock_pallas.1} parent=0 // pred_check_branch
    %29 = sbr.rel (0) target = $region29
  $region28: #{skipblock_pallas.1} parent=0 // pred_region
    _
  $region29: #{skipblock_pallas.1} parent=0 // pred_fallthru
    _
  // Predicated region
  $region30: #{skipblock_pallas.1} parent=0 // pred_check
    _
  $region31: #{skipblock_pallas.1} parent=0 // pred_check_branch
    %31 = sbr.rel (0) target = $region33
  $region32: #{skipblock_pallas.1} parent=0 // pred_region
    _
  $region33: #{skipblock_pallas.1} parent=0 // pred_fallthru
    _
  // Predicated region
  $region34: #{skipblock_pallas.1} parent=0 // pred_check
    _
  $region35: #{skipblock_pallas.1} parent=0 // pred_check_branch
    %33 = sbr.rel (0) target = $region37
  $region36: #{skipblock_pallas.1} parent=0 // pred_region
    _
  $region37: #{skipblock_pallas.1} parent=0 // pred_fallthru
    _
  // Predicated region
  $region38: #{skipblock_pallas.1} parent=0 // pred_check
    _
  $region39: #{skipblock_pallas.1} parent=0 // pred_check_branch
    %35 = sbr.rel (0) target = $region41
  $region40: #{skipblock_pallas.1} parent=0 // pred_region
    _
  $region41: #{skipblock_pallas.1} parent=0 // pred_fallthru
    _
  // Predicated region
  $region42: #{skipblock_pallas.1} parent=0 // pred_check
    _
  $region43: #{skipblock_pallas.1} parent=0 // pred_check_branch
    %37 = sbr.rel (0) target = $region45
  $region44: #{skipblock_pallas.1} parent=0 // pred_region
    _
  $region45: #{skipblock_pallas.1} parent=0 // pred_fallthru
    _
  %v38 = vld [vmem:[%s0] sm:$0xff]
  %v39 = vld [vmem:[%s0 + $0x8] sm:$0xff]
  %v40 = vld [vmem:[%s0 + $0x10] sm:$0xff]
  %v41 = vld [vmem:[%s0 + $0x18] sm:$0xff]
  %42 = vrot.lane.b32.xlu0 %v38, 17
  %v43 = vpop.permute.xlu0 %42
  %44 = vrot.lane.b32.xlu0 %v39, 17
  %v45 = vpop.permute.xlu0 %44
  %46 = vrot.lane.b32.xlu0 %v40, 17
  %v47 = vpop.permute.xlu0 %46
  %48 = vrot.lane.b32.xlu0 %v41, 17
  %v49 = vpop.permute.xlu0 %48
  %v50 = vlaneseq
  %v51 = vand.u32 %v50, 127
  %vm52 = vcmp.lt.s32.totalorder %v51, 17
  %v53 = vsel %vm52, %v47, %v49
  %v54 = vsel %vm52, %v45, %v47
  %v55 = vsel %vm52, %v43, %v45
  %v56 = vsel %vm52, %v49, %v43
  %57 = vrot.lane.b32.xlu0 %v38, 16
  %v58 = vpop.permute.xlu0 %57
  %59 = vrot.lane.b32.xlu0 %v39, 16
  %v60 = vpop.permute.xlu0 %59
  %61 = vrot.lane.b32.xlu0 %v40, 16
  %v62 = vpop.permute.xlu0 %61
  %63 = vrot.lane.b32.xlu0 %v41, 16
  %v64 = vpop.permute.xlu0 %63
  %vm65 = vcmp.lt.s32.totalorder %v51, 16
  %v66 = vsel %vm65, %v62, %v64
  %v67 = vsel %vm65, %v60, %v62
  %v68 = vsel %vm65, %v58, %v60
  %v69 = vsel %vm65, %v64, %v58
  %70 = vrot.lane.b32.xlu0 %v38, 15
  %v71 = vpop.permute.xlu0 %70
  %72 = vrot.lane.b32.xlu0 %v39, 15
  %v73 = vpop.permute.xlu0 %72
  %74 = vrot.lane.b32.xlu0 %v40, 15
  %v75 = vpop.permute.xlu0 %74
  %76 = vrot.lane.b32.xlu0 %v41, 15
  %v77 = vpop.permute.xlu0 %76
  %vm78 = vcmp.lt.s32.totalorder %v51, 15
  %v79 = vsel %vm78, %v75, %v77
  %v80 = vsel %vm78, %v73, %v75
  %v81 = vsel %vm78, %v71, %v73
  %v82 = vsel %vm78, %v77, %v71
  %83 = vrot.lane.b32.xlu0 %v38, 1
  %v84 = vpop.permute.xlu0 %83
  %85 = vrot.lane.b32.xlu0 %v39, 1
  %v86 = vpop.permute.xlu0 %85
  %87 = vrot.lane.b32.xlu0 %v40, 1
  %v88 = vpop.permute.xlu0 %87
  %89 = vrot.lane.b32.xlu0 %v41, 1
  %v90 = vpop.permute.xlu0 %89
  %vm91 = vcmp.lt.s32.totalorder %v51, 1
  %v92 = vsel %vm91, %v88, %v90
  %v93 = vsel %vm91, %v86, %v88
  %v94 = vsel %vm91, %v84, %v86
  %v95 = vsel %vm91, %v90, %v84
  %96 = vrot.lane.b32.xlu0 %v38, 127
  %v97 = vpop.permute.xlu0 %96
  %98 = vrot.lane.b32.xlu0 %v39, 127
  %v99 = vpop.permute.xlu0 %98
  %100 = vrot.lane.b32.xlu0 %v40, 127
  %v101 = vpop.permute.xlu0 %100
  %102 = vrot.lane.b32.xlu0 %v41, 127
  %v103 = vpop.permute.xlu0 %102
  %vm104 = vcmp.lt.s32.totalorder %v51, 127
  %v105 = vsel %vm104, %v101, %v103
  %v106 = vsel %vm104, %v99, %v101
  %v107 = vsel %vm104, %v97, %v99
  %v108 = vsel %vm104, %v103, %v97
  %109 = vrot.lane.b32.xlu0 %v38, 113
  %v110 = vpop.permute.xlu0 %109
  %111 = vrot.lane.b32.xlu0 %v39, 113
  %v112 = vpop.permute.xlu0 %111
  %113 = vrot.lane.b32.xlu0 %v40, 113
  %v114 = vpop.permute.xlu0 %113
  %115 = vrot.lane.b32.xlu0 %v41, 113
  %v116 = vpop.permute.xlu0 %115
  %vm117 = vcmp.lt.s32.totalorder %v51, 113
  %v118 = vsel %vm117, %v114, %v116
  %v119 = vsel %vm117, %v112, %v114
  %v120 = vsel %vm117, %v110, %v112
  %v121 = vsel %vm117, %v116, %v110
  %122 = vrot.lane.b32.xlu0 %v38, 112
  %v123 = vpop.permute.xlu0 %122
  %124 = vrot.lane.b32.xlu0 %v39, 112
  %v125 = vpop.permute.xlu0 %124
  %126 = vrot.lane.b32.xlu0 %v40, 112
  %v127 = vpop.permute.xlu0 %126
  %128 = vrot.lane.b32.xlu0 %v41, 112
  %v129 = vpop.permute.xlu0 %128
  %vm130 = vcmp.lt.s32.totalorder %v51, 112
  %v131 = vsel %vm130, %v127, %v129
  %v132 = vsel %vm130, %v125, %v127
  %v133 = vsel %vm130, %v123, %v125
  %v134 = vsel %vm130, %v129, %v123
  %135 = vrot.lane.b32.xlu0 %v38, 111
  %v136 = vpop.permute.xlu0 %135
  %137 = vrot.lane.b32.xlu0 %v39, 111
  %v138 = vpop.permute.xlu0 %137
  %139 = vrot.lane.b32.xlu0 %v40, 111
  %v140 = vpop.permute.xlu0 %139
  %141 = vrot.lane.b32.xlu0 %v41, 111
  %v142 = vpop.permute.xlu0 %141
  %vm143 = vcmp.lt.s32.totalorder %v51, 111
  %v144 = vsel %vm143, %v140, %v142
  %v145 = vsel %vm143, %v138, %v140
  %v146 = vsel %vm143, %v136, %v138
  %v147 = vsel %vm143, %v142, %v136
  %v148 = vld [vmem:[%s1] sm:$0xff]
  %v149 = vld [vmem:[%s1 + $0x8] sm:$0xff]
  %v150 = vld [vmem:[%s1 + $0x10] sm:$0xff]
  %v151 = vld [vmem:[%s1 + $0x18] sm:$0xff]
  %v152 = vld [vmem:[%s1 + $0x20] sm:$0xff]
  %v153 = vld [vmem:[%s1 + $0x28] sm:$0xff]
  %v154 = vld [vmem:[%s1 + $0x30] sm:$0xff]
  %v155 = vld [vmem:[%s1 + $0x38] sm:$0xff]
  %v156 = vld [vmem:[%s1 + $0x40] sm:$0xff]
  %v157 = vld [vmem:[%s1 + $0x48] sm:$0xff]
  %v158 = vld [vmem:[%s1 + $0x50] sm:$0xff]
  %v159 = vld [vmem:[%s1 + $0x58] sm:$0xff]
  %v160 = vld [vmem:[%s1 + $0x60] sm:$0xff]
  %v161 = vld [vmem:[%s1 + $0x68] sm:$0xff]
  %v162 = vld [vmem:[%s1 + $0x70] sm:$0xff]
  %v163 = vld [vmem:[%s1 + $0x78] sm:$0xff]
  %v164 = vld [vmem:[%s1 + $0x80] sm:$0xff]
  %v165 = vld [vmem:[%s1 + $0x88] sm:$0xff]
  %v166 = vld [vmem:[%s1 + $0x90] sm:$0xff]
  %v167 = vld [vmem:[%s1 + $0x98] sm:$0xff]
  %v168 = vld [vmem:[%s1 + $0xa0] sm:$0xff]
  %v169 = vld [vmem:[%s1 + $0xa8] sm:$0xff]
  %v170 = vld [vmem:[%s1 + $0xb0] sm:$0xff]
  %v171 = vld [vmem:[%s1 + $0xb8] sm:$0xff]
  %v172 = vld [vmem:[%s1 + $0xc0] sm:$0xff]
  %v173 = vld [vmem:[%s1 + $0xc8] sm:$0xff]
  %v174 = vld [vmem:[%s1 + $0xd0] sm:$0xff]
  %v175 = vld [vmem:[%s1 + $0xd8] sm:$0xff]
  %v176 = vld [vmem:[%s1 + $0xe0] sm:$0xff]
  %v177 = vld [vmem:[%s1 + $0xe8] sm:$0xff]
  %v178 = vld [vmem:[%s1 + $0xf0] sm:$0xff]
  %v179 = vld [vmem:[%s1 + $0xf8] sm:$0xff]
  %v180 = vld [vmem:[%s1 + $0x100] sm:$0xff]
  %v181 = vld [vmem:[%s1 + $0x108] sm:$0xff]
  %v182 = vld [vmem:[%s1 + $0x110] sm:$0xff]
  %v183 = vld [vmem:[%s1 + $0x118] sm:$0xff]
  %v184 = vmul.f32 %v56, %v148
  %v185 = vmul.f32 %v55, %v149
  %v186 = vmul.f32 %v54, %v150
  %v187 = vmul.f32 %v53, %v151
  %v188 = vmul.f32 %v69, %v152
  %v189 = vmul.f32 %v68, %v153
  %v190 = vmul.f32 %v67, %v154
  %v191 = vmul.f32 %v66, %v155
  %v192 = vmul.f32 %v82, %v156
  %v193 = vmul.f32 %v81, %v157
  %v194 = vmul.f32 %v80, %v158
  %v195 = vmul.f32 %v79, %v159
  %v196 = vmul.f32 %v95, %v160
  %v197 = vmul.f32 %v94, %v161
  %v198 = vmul.f32 %v93, %v162
  %v199 = vmul.f32 %v92, %v163
  %v200 = vmul.f32 %v38, %v164
  %v201 = vmul.f32 %v39, %v165
  %v202 = vmul.f32 %v40, %v166
  %v203 = vmul.f32 %v41, %v167
  %v204 = vmul.f32 %v107, %v168
  %v205 = vmul.f32 %v106, %v169
  %v206 = vmul.f32 %v105, %v170
  %v207 = vmul.f32 %v108, %v171
  %v208 = vmul.f32 %v120, %v172
  %v209 = vmul.f32 %v119, %v173
  %v210 = vmul.f32 %v118, %v174
  %v211 = vmul.f32 %v121, %v175
  %v212 = vmul.f32 %v133, %v176
  %v213 = vmul.f32 %v132, %v177
  %v214 = vmul.f32 %v131, %v178
  %v215 = vmul.f32 %v134, %v179
  %v216 = vmul.f32 %v146, %v180
  %v217 = vmul.f32 %v145, %v181
  %v218 = vmul.f32 %v144, %v182
  %v219 = vmul.f32 %v147, %v183
  %v220 = vld [vmem:[%s3] sm:$0xff]
  %v221 = vld [vmem:[%s4] sm:$0xff]
  %223 = vset.pattern.permute.xlu0 0
  %224 = vperm.xlu0 %223, %v221
  %v225 = vpop.permute.xlu0 %224
  %vm227 = vcmask 588800
  %v229 = vsel %vm227, %v220, 0
  %231 = vmatprep.subr.mxu0 %v185
  %232 = vmatpush1.msra.mxu0 %v184
  %233 = vmatprep.subr.mxu0 %v189
  %234 = vmatpush1.msra.mxu0 %v188
  %235 = vmatprep.subr.mxu0 %v193
  %236 = vmatpush1.msra.mxu0 %v192
  %237 = vmatprep.subr.mxu0 %v197
  %238 = vmatpush1.msra.mxu0 %v196
  %239 = vmatprep.subr.mxu0 %v201
  %240 = vmatpush1.msra.mxu0 %v200
  %241 = vmatprep.subr.mxu0 %v205
  %242 = vmatpush1.msra.mxu0 %v204
  %243 = vmatprep.subr.mxu0 %v209
  %244 = vmatpush1.msra.mxu0 %v208
  %245 = vmatprep.subr.mxu0 %v213
  %246 = vmatpush1.msra.mxu0 %v212
  %247 = vmatprep.subr.mxu0 %v217
  %248 = vmatpush1.msra.mxu0 %v216
  %249 = vmatprep.subr.mxu0 0.0
  %250 = vmatpush1.msra.mxu0 0.0
  %251 = vmatprep.subr.mxu0 0.0
  %252 = vmatpush1.msra.mxu0 0.0
  %253 = vmatprep.subr.mxu0 0.0
  %254 = vmatpush1.msra.mxu0 0.0
  %255 = vmatprep.subr.mxu0 0.0
  %256 = vmatpush1.msra.mxu0 0.0
  %257 = vmatprep.subr.mxu0 0.0
  %258 = vmatpush1.msra.mxu0 0.0
  %259 = vmatprep.subr.mxu0 0.0
  %260 = vmatpush1.msra.mxu0 0.0
  %261 = vmatprep.subr.mxu0 0.0
  %262 = vmatpush1.msra.mxu0 0.0
  %263 = vmatprep.subr.mxu0 0.0
  %264 = vmatpush1.msra.mxu0 0.0
  %265 = vmatprep.subr.mxu0 0.0
  %266 = vmatpush1.msra.mxu0 0.0
  %267 = vmatprep.subr.mxu0 0.0
  %268 = vmatpush1.msra.mxu0 0.0
  %269 = vmatprep.subr.mxu0 0.0
  %270 = vmatpush1.msra.mxu0 0.0
  %271 = vmatprep.subr.mxu0 0.0
  %272 = vmatpush1.msra.mxu0 0.0
  %273 = vmatprep.subr.mxu0 0.0
  %274 = vmatpush1.msra.mxu0 0.0
  %275 = vmatprep.subr.mxu0 0.0
  %276 = vmatpush1.msra.mxu0 0.0
  %277 = vmatprep.subr.mxu0 0.0
  %278 = vmatpush1.msra.mxu0 0.0
  %279 = vmatprep.subr.mxu0 0.0
  %280 = vmatpush1.msra.mxu0 0.0
  %281 = vmatprep.subr.mxu0 0.0
  %282 = vmatpush1.msra.mxu0 0.0
  %283 = vmatprep.subr.mxu0 0.0
  %284 = vmatpush1.msra.mxu0 0.0
  %285 = vmatprep.subr.mxu0 0.0
  %286 = vmatpush1.msra.mxu0 0.0
  %287 = vmatprep.subr.mxu0 0.0
  %288 = vmatpush1.msra.mxu0 0.0
  %289 = vmatprep.subr.mxu0 0.0
  %290 = vmatpush1.msra.mxu0 0.0
  %291 = vmatprep.subr.mxu0 0.0
  %292 = vmatpush1.msra.mxu0 0.0
  %293 = vmatprep.subr.mxu0 0.0
  %294 = vmatpush1.msra.mxu0 0.0
  %295 = vmatprep.mubr.f32.mxu0 0.0
  %296 = vmatmul.mubr.f32.gmra.mrb[0].mxu0 %v229
  %v297 = vpop.f32.mrb[0].mxu0
  %v298 = vadd.f32 %v225, %v297
  %v299 = vpop.f32.mrb[0].mxu0
  %v300 = vadd.f32 %v225, %v299
  %301 = vdwg.mxu0
  %302 = vmatprep.subr.mxu0 %v187
  %303 = vmatpush1.msra.mxu0 %v186
  %304 = vmatprep.subr.mxu0 %v191
  %305 = vmatpush1.msra.mxu0 %v190
  %306 = vmatprep.subr.mxu0 %v195
  %307 = vmatpush1.msra.mxu0 %v194
  %308 = vmatprep.subr.mxu0 %v199
  %309 = vmatpush1.msra.mxu0 %v198
  %310 = vmatprep.subr.mxu0 %v203
  %311 = vmatpush1.msra.mxu0 %v202
  %312 = vmatprep.subr.mxu0 %v207
  %313 = vmatpush1.msra.mxu0 %v206
  %314 = vmatprep.subr.mxu0 %v211
  %315 = vmatpush1.msra.mxu0 %v210
  %316 = vmatprep.subr.mxu0 %v215
  %317 = vmatpush1.msra.mxu0 %v214
  %318 = vmatprep.subr.mxu0 %v219
  %319 = vmatpush1.msra.mxu0 %v218
  %320 = vmatprep.subr.mxu0 0.0
  %321 = vmatpush1.msra.mxu0 0.0
  %322 = vmatprep.subr.mxu0 0.0
  %323 = vmatpush1.msra.mxu0 0.0
  %324 = vmatprep.subr.mxu0 0.0
  %325 = vmatpush1.msra.mxu0 0.0
  %326 = vmatprep.subr.mxu0 0.0
  %327 = vmatpush1.msra.mxu0 0.0
  %328 = vmatprep.subr.mxu0 0.0
  %329 = vmatpush1.msra.mxu0 0.0
  %330 = vmatprep.subr.mxu0 0.0
  %331 = vmatpush1.msra.mxu0 0.0
  %332 = vmatprep.subr.mxu0 0.0
  %333 = vmatpush1.msra.mxu0 0.0
  %334 = vmatprep.subr.mxu0 0.0
  %335 = vmatpush1.msra.mxu0 0.0
  %336 = vmatprep.subr.mxu0 0.0
  %337 = vmatpush1.msra.mxu0 0.0
  %338 = vmatprep.subr.mxu0 0.0
  %339 = vmatpush1.msra.mxu0 0.0
  %340 = vmatprep.subr.mxu0 0.0
  %341 = vmatpush1.msra.mxu0 0.0
  %342 = vmatprep.subr.mxu0 0.0
  %343 = vmatpush1.msra.mxu0 0.0
  %344 = vmatprep.subr.mxu0 0.0
  %345 = vmatpush1.msra.mxu0 0.0
  %346 = vmatprep.subr.mxu0 0.0
  %347 = vmatpush1.msra.mxu0 0.0
  %348 = vmatprep.subr.mxu0 0.0
  %349 = vmatpush1.msra.mxu0 0.0
  %350 = vmatprep.subr.mxu0 0.0
  %351 = vmatpush1.msra.mxu0 0.0
  %352 = vmatprep.subr.mxu0 0.0
  %353 = vmatpush1.msra.mxu0 0.0
  %354 = vmatprep.subr.mxu0 0.0
  %355 = vmatpush1.msra.mxu0 0.0
  %356 = vmatprep.subr.mxu0 0.0
  %357 = vmatpush1.msra.mxu0 0.0
  %358 = vmatprep.subr.mxu0 0.0
  %359 = vmatpush1.msra.mxu0 0.0
  %360 = vmatprep.subr.mxu0 0.0
  %361 = vmatpush1.msra.mxu0 0.0
  %362 = vmatprep.subr.mxu0 0.0
  %363 = vmatpush1.msra.mxu0 0.0
  %364 = vmatprep.subr.mxu0 0.0
  %365 = vmatpush1.msra.mxu0 0.0
  %366 = vmatprep.mubr.f32.mxu0 0.0
  %367 = vmatmul.mubr.f32.gmra.mrb[0].mxu0 %v229
  %v368 = vpop.f32.mrb[0].mxu0
  %v369 = vadd.f32 %v225, %v368
  %v370 = vpop.f32.mrb[0].mxu0
  %v371 = vadd.f32 %v225, %v370
  %372 = vdwg.mxu0
  %v373 = vmax.f32 %v298, 0.0
  %v374 = vmax.f32 %v300, 0.0
  %v375 = vmax.f32 %v369, 0.0
  %v376 = vmax.f32 %v371, 0.0
  %377 = vrot.lane.b32.xlu0 %v373, 17
  %v378 = vpop.permute.xlu0 %377
  %379 = vrot.lane.b32.xlu0 %v374, 17
  %v380 = vpop.permute.xlu0 %379
  %381 = vrot.lane.b32.xlu0 %v375, 17
  %v382 = vpop.permute.xlu0 %381
  %383 = vrot.lane.b32.xlu0 %v376, 17
  %v384 = vpop.permute.xlu0 %383
  %v385 = vsel %vm52, %v382, %v384
  %v386 = vsel %vm52, %v380, %v382
  %v387 = vsel %vm52, %v378, %v380
  %v388 = vsel %vm52, %v384, %v378
  %389 = vrot.lane.b32.xlu0 %v373, 16
  %v390 = vpop.permute.xlu0 %389
  %391 = vrot.lane.b32.xlu0 %v374, 16
  %v392 = vpop.permute.xlu0 %391
  %393 = vrot.lane.b32.xlu0 %v375, 16
  %v394 = vpop.permute.xlu0 %393
  %395 = vrot.lane.b32.xlu0 %v376, 16
  %v396 = vpop.permute.xlu0 %395
  %v397 = vsel %vm65, %v394, %v396
  %v398 = vsel %vm65, %v392, %v394
  %v399 = vsel %vm65, %v390, %v392
  %v400 = vsel %vm65, %v396, %v390
  %401 = vrot.lane.b32.xlu0 %v373, 15
  %v402 = vpop.permute.xlu0 %401
  %403 = vrot.lane.b32.xlu0 %v374, 15
  %v404 = vpop.permute.xlu0 %403
  %405 = vrot.lane.b32.xlu0 %v375, 15
  %v406 = vpop.permute.xlu0 %405
  %407 = vrot.lane.b32.xlu0 %v376, 15
  %v408 = vpop.permute.xlu0 %407
  %v409 = vsel %vm78, %v406, %v408
  %v410 = vsel %vm78, %v404, %v406
  %v411 = vsel %vm78, %v402, %v404
  %v412 = vsel %vm78, %v408, %v402
  %413 = vrot.lane.b32.xlu0 %v373, 1
  %v414 = vpop.permute.xlu0 %413
  %415 = vrot.lane.b32.xlu0 %v374, 1
  %v416 = vpop.permute.xlu0 %415
  %417 = vrot.lane.b32.xlu0 %v375, 1
  %v418 = vpop.permute.xlu0 %417
  %419 = vrot.lane.b32.xlu0 %v376, 1
  %v420 = vpop.permute.xlu0 %419
  %v421 = vsel %vm91, %v418, %v420
  %v422 = vsel %vm91, %v416, %v418
  %v423 = vsel %vm91, %v414, %v416
  %v424 = vsel %vm91, %v420, %v414
  %425 = vrot.lane.b32.xlu0 %v373, 127
  %v426 = vpop.permute.xlu0 %425
  %427 = vrot.lane.b32.xlu0 %v374, 127
  %v428 = vpop.permute.xlu0 %427
  %429 = vrot.lane.b32.xlu0 %v375, 127
  %v430 = vpop.permute.xlu0 %429
  %431 = vrot.lane.b32.xlu0 %v376, 127
  %v432 = vpop.permute.xlu0 %431
  %v433 = vsel %vm104, %v430, %v432
  %v434 = vsel %vm104, %v428, %v430
  %v435 = vsel %vm104, %v426, %v428
  %v436 = vsel %vm104, %v432, %v426
  %437 = vrot.lane.b32.xlu0 %v373, 113
  %v438 = vpop.permute.xlu0 %437
  %439 = vrot.lane.b32.xlu0 %v374, 113
  %v440 = vpop.permute.xlu0 %439
  %441 = vrot.lane.b32.xlu0 %v375, 113
  %v442 = vpop.permute.xlu0 %441
  %443 = vrot.lane.b32.xlu0 %v376, 113
  %v444 = vpop.permute.xlu0 %443
  %v445 = vsel %vm117, %v442, %v444
  %v446 = vsel %vm117, %v440, %v442
  %v447 = vsel %vm117, %v438, %v440
  %v448 = vsel %vm117, %v444, %v438
  %449 = vrot.lane.b32.xlu0 %v373, 112
  %v450 = vpop.permute.xlu0 %449
  %451 = vrot.lane.b32.xlu0 %v374, 112
  %v452 = vpop.permute.xlu0 %451
  %453 = vrot.lane.b32.xlu0 %v375, 112
  %v454 = vpop.permute.xlu0 %453
  %455 = vrot.lane.b32.xlu0 %v376, 112
  %v456 = vpop.permute.xlu0 %455
  %v457 = vsel %vm130, %v454, %v456
  %v458 = vsel %vm130, %v452, %v454
  %v459 = vsel %vm130, %v450, %v452
  %v460 = vsel %vm130, %v456, %v450
  %461 = vrot.lane.b32.xlu0 %v373, 111
  %v462 = vpop.permute.xlu0 %461
  %463 = vrot.lane.b32.xlu0 %v374, 111
  %v464 = vpop.permute.xlu0 %463
  %465 = vrot.lane.b32.xlu0 %v375, 111
  %v466 = vpop.permute.xlu0 %465
  %467 = vrot.lane.b32.xlu0 %v376, 111
  %v468 = vpop.permute.xlu0 %467
  %v469 = vsel %vm143, %v466, %v468
  %v470 = vsel %vm143, %v464, %v466
  %v471 = vsel %vm143, %v462, %v464
  %v472 = vsel %vm143, %v468, %v462
  %v473 = vld [vmem:[%s5] sm:$0xff]
  %v474 = vld [vmem:[%s5 + $0x8] sm:$0xff]
  %v475 = vld [vmem:[%s5 + $0x10] sm:$0xff]
  %v476 = vld [vmem:[%s5 + $0x18] sm:$0xff]
  %v477 = vmul.f32 %v473, %v388
  %v478 = vmul.f32 %v474, %v387
  %v479 = vmul.f32 %v475, %v386
  %v480 = vmul.f32 %v476, %v385
  %s481 = scalar_lea.vmem %s5, 32
  %v482 = vld [vmem:[%s481] sm:$0xff]
  %v483 = vld [vmem:[%s481 + $0x8] sm:$0xff]
  %v484 = vld [vmem:[%s481 + $0x10] sm:$0xff]
  %v485 = vld [vmem:[%s481 + $0x18] sm:$0xff]
  %v486 = vmul.f32 %v482, %v400
  %v487 = vmul.f32 %v483, %v399
  %v488 = vmul.f32 %v484, %v398
  %v489 = vmul.f32 %v485, %v397
  %v490 = vadd.f32 %v477, %v486
  %v491 = vadd.f32 %v478, %v487
  %v492 = vadd.f32 %v479, %v488
  %v493 = vadd.f32 %v480, %v489
  %s494 = scalar_lea.vmem %s5, 64
  %v495 = vld [vmem:[%s494] sm:$0xff]
  %v496 = vld [vmem:[%s494 + $0x8] sm:$0xff]
  %v497 = vld [vmem:[%s494 + $0x10] sm:$0xff]
  %v498 = vld [vmem:[%s494 + $0x18] sm:$0xff]
  %v499 = vmul.f32 %v495, %v412
  %v500 = vmul.f32 %v496, %v411
  %v501 = vmul.f32 %v497, %v410
  %v502 = vmul.f32 %v498, %v409
  %v503 = vadd.f32 %v490, %v499
  %v504 = vadd.f32 %v491, %v500
  %v505 = vadd.f32 %v492, %v501
  %v506 = vadd.f32 %v493, %v502
  %s507 = scalar_lea.vmem %s5, 96
  %v508 = vld [vmem:[%s507] sm:$0xff]
  %v509 = vld [vmem:[%s507 + $0x8] sm:$0xff]
  %v510 = vld [vmem:[%s507 + $0x10] sm:$0xff]
  %v511 = vld [vmem:[%s507 + $0x18] sm:$0xff]
  %v512 = vmul.f32 %v508, %v424
  %v513 = vmul.f32 %v509, %v423
  %v514 = vmul.f32 %v510, %v422
  %v515 = vmul.f32 %v511, %v421
  %v516 = vadd.f32 %v503, %v512
  %v517 = vadd.f32 %v504, %v513
  %v518 = vadd.f32 %v505, %v514
  %v519 = vadd.f32 %v506, %v515
  %s520 = scalar_lea.vmem %s5, 128
  %v521 = vld [vmem:[%s520] sm:$0xff]
  %v522 = vld [vmem:[%s520 + $0x8] sm:$0xff]
  %v523 = vld [vmem:[%s520 + $0x10] sm:$0xff]
  %v524 = vld [vmem:[%s520 + $0x18] sm:$0xff]
  %v525 = vmul.f32 %v521, %v373
  %v526 = vmul.f32 %v522, %v374
  %v527 = vmul.f32 %v523, %v375
  %v528 = vmul.f32 %v524, %v376
  %v529 = vadd.f32 %v516, %v525
  %v530 = vadd.f32 %v517, %v526
  %v531 = vadd.f32 %v518, %v527
  %v532 = vadd.f32 %v519, %v528
  %s533 = scalar_lea.vmem %s5, 160
  %v534 = vld [vmem:[%s533] sm:$0xff]
  %v535 = vld [vmem:[%s533 + $0x8] sm:$0xff]
  %v536 = vld [vmem:[%s533 + $0x10] sm:$0xff]
  %v537 = vld [vmem:[%s533 + $0x18] sm:$0xff]
  %v538 = vmul.f32 %v534, %v435
  %v539 = vmul.f32 %v535, %v434
  %v540 = vmul.f32 %v536, %v433
  %v541 = vmul.f32 %v537, %v436
  %v542 = vadd.f32 %v529, %v538
  %v543 = vadd.f32 %v530, %v539
  %v544 = vadd.f32 %v531, %v540
  %v545 = vadd.f32 %v532, %v541
  %s546 = scalar_lea.vmem %s5, 192
  %v547 = vld [vmem:[%s546] sm:$0xff]
  %v548 = vld [vmem:[%s546 + $0x8] sm:$0xff]
  %v549 = vld [vmem:[%s546 + $0x10] sm:$0xff]
  %v550 = vld [vmem:[%s546 + $0x18] sm:$0xff]
  %v551 = vmul.f32 %v547, %v447
  %v552 = vmul.f32 %v548, %v446
  %v553 = vmul.f32 %v549, %v445
  %v554 = vmul.f32 %v550, %v448
  %v555 = vadd.f32 %v542, %v551
  %v556 = vadd.f32 %v543, %v552
  %v557 = vadd.f32 %v544, %v553
  %v558 = vadd.f32 %v545, %v554
  %s559 = scalar_lea.vmem %s5, 224
  %v560 = vld [vmem:[%s559] sm:$0xff]
  %v561 = vld [vmem:[%s559 + $0x8] sm:$0xff]
  %v562 = vld [vmem:[%s559 + $0x10] sm:$0xff]
  %v563 = vld [vmem:[%s559 + $0x18] sm:$0xff]
  %v564 = vmul.f32 %v560, %v459
  %v565 = vmul.f32 %v561, %v458
  %v566 = vmul.f32 %v562, %v457
  %v567 = vmul.f32 %v563, %v460
  %v568 = vadd.f32 %v555, %v564
  %v569 = vadd.f32 %v556, %v565
  %v570 = vadd.f32 %v557, %v566
  %v571 = vadd.f32 %v558, %v567
  %s572 = scalar_lea.vmem %s5, 256
  %v573 = vld [vmem:[%s572] sm:$0xff]
  %v574 = vld [vmem:[%s572 + $0x8] sm:$0xff]
  %v575 = vld [vmem:[%s572 + $0x10] sm:$0xff]
  %v576 = vld [vmem:[%s572 + $0x18] sm:$0xff]
  %v577 = vmul.f32 %v573, %v471
  %v578 = vmul.f32 %v574, %v470
  %v579 = vmul.f32 %v575, %v469
  %v580 = vmul.f32 %v576, %v472
  %v581 = vadd.f32 %v568, %v577
  %v582 = vadd.f32 %v569, %v578
  %v583 = vadd.f32 %v570, %v579
  %v584 = vadd.f32 %v571, %v580
  %v585 = vld [vmem:[%s6] sm:$0xff]
  %587 = vset.pattern.permute.xlu0 0
  %588 = vperm.xlu0 %587, %v585
  %v589 = vpop.permute.xlu0 %588
  %v591 = vadd.f32 %v581, %v589
  %v592 = vadd.f32 %v582, %v589
  %v593 = vadd.f32 %v583, %v589
  %v594 = vadd.f32 %v584, %v589
  %v595 = vmax.f32 %v591, 0.0
  %v596 = vmax.f32 %v592, 0.0
  %v597 = vmax.f32 %v593, 0.0
  %v598 = vmax.f32 %v594, 0.0
  %v599 = vld [vmem:[%s7] sm:$0xff]
  %v600 = vld [vmem:[%s8] sm:$0xff]
  %602 = vset.pattern.permute.xlu0 0
  %603 = vperm.xlu0 %602, %v600
  %v604 = vpop.permute.xlu0 %603
  %vm606 = vcmask 64512
  %v608 = vsel %vm606, %v599, 0
  %610 = vmatprep.subr.mxu0 %v596
  %611 = vmatpush1.msra.mxu0 %v595
  %612 = vmatprep.subr.mxu0 0.0
  %613 = vmatpush1.msra.mxu0 0.0
  %614 = vmatprep.subr.mxu0 0.0
  %615 = vmatpush1.msra.mxu0 0.0
  %616 = vmatprep.subr.mxu0 0.0
  %617 = vmatpush1.msra.mxu0 0.0
  %618 = vmatprep.subr.mxu0 0.0
  %619 = vmatpush1.msra.mxu0 0.0
  %620 = vmatprep.subr.mxu0 0.0
  %621 = vmatpush1.msra.mxu0 0.0
  %622 = vmatprep.subr.mxu0 0.0
  %623 = vmatpush1.msra.mxu0 0.0
  %624 = vmatprep.subr.mxu0 0.0
  %625 = vmatpush1.msra.mxu0 0.0
  %626 = vmatprep.subr.mxu0 0.0
  %627 = vmatpush1.msra.mxu0 0.0
  %628 = vmatprep.subr.mxu0 0.0
  %629 = vmatpush1.msra.mxu0 0.0
  %630 = vmatprep.subr.mxu0 0.0
  %631 = vmatpush1.msra.mxu0 0.0
  %632 = vmatprep.subr.mxu0 0.0
  %633 = vmatpush1.msra.mxu0 0.0
  %634 = vmatprep.subr.mxu0 0.0
  %635 = vmatpush1.msra.mxu0 0.0
  %636 = vmatprep.subr.mxu0 0.0
  %637 = vmatpush1.msra.mxu0 0.0
  %638 = vmatprep.subr.mxu0 0.0
  %639 = vmatpush1.msra.mxu0 0.0
  %640 = vmatprep.subr.mxu0 0.0
  %641 = vmatpush1.msra.mxu0 0.0
  %642 = vmatprep.subr.mxu0 0.0
  %643 = vmatpush1.msra.mxu0 0.0
  %644 = vmatprep.subr.mxu0 0.0
  %645 = vmatpush1.msra.mxu0 0.0
  %646 = vmatprep.subr.mxu0 0.0
  %647 = vmatpush1.msra.mxu0 0.0
  %648 = vmatprep.subr.mxu0 0.0
  %649 = vmatpush1.msra.mxu0 0.0
  %650 = vmatprep.subr.mxu0 0.0
  %651 = vmatpush1.msra.mxu0 0.0
  %652 = vmatprep.subr.mxu0 0.0
  %653 = vmatpush1.msra.mxu0 0.0
  %654 = vmatprep.subr.mxu0 0.0
  %655 = vmatpush1.msra.mxu0 0.0
  %656 = vmatprep.subr.mxu0 0.0
  %657 = vmatpush1.msra.mxu0 0.0
  %658 = vmatprep.subr.mxu0 0.0
  %659 = vmatpush1.msra.mxu0 0.0
  %660 = vmatprep.subr.mxu0 0.0
  %661 = vmatpush1.msra.mxu0 0.0
  %662 = vmatprep.subr.mxu0 0.0
  %663 = vmatpush1.msra.mxu0 0.0
  %664 = vmatprep.subr.mxu0 0.0
  %665 = vmatpush1.msra.mxu0 0.0
  %666 = vmatprep.subr.mxu0 0.0
  %667 = vmatpush1.msra.mxu0 0.0
  %668 = vmatprep.subr.mxu0 0.0
  %669 = vmatpush1.msra.mxu0 0.0
  %670 = vmatprep.subr.mxu0 0.0
  %671 = vmatpush1.msra.mxu0 0.0
  %672 = vmatprep.subr.mxu0 0.0
  %673 = vmatpush1.msra.mxu0 0.0
  %674 = vmatprep.mubr.f32.mxu0 0.0
  %675 = vmatmul.mubr.f32.gmra.mrb[0].mxu0 %v608
  %v676 = vpop.f32.mrb[0].mxu0
  %v677 = vadd.f32 %v604, %v676
  %v678 = vpop.f32.mrb[0].mxu0
  %v679 = vadd.f32 %v604, %v678
  %680 = vdwg.mxu0
  %681 = vmatprep.subr.mxu0 %v598
  %682 = vmatpush1.msra.mxu0 %v597
  %683 = vmatprep.subr.mxu0 0.0
  %684 = vmatpush1.msra.mxu0 0.0
  %685 = vmatprep.subr.mxu0 0.0
  %686 = vmatpush1.msra.mxu0 0.0
  %687 = vmatprep.subr.mxu0 0.0
  %688 = vmatpush1.msra.mxu0 0.0
  %689 = vmatprep.subr.mxu0 0.0
  %690 = vmatpush1.msra.mxu0 0.0
  %691 = vmatprep.subr.mxu0 0.0
  %692 = vmatpush1.msra.mxu0 0.0
  %693 = vmatprep.subr.mxu0 0.0
  %694 = vmatpush1.msra.mxu0 0.0
  %695 = vmatprep.subr.mxu0 0.0
  %696 = vmatpush1.msra.mxu0 0.0
  %697 = vmatprep.subr.mxu0 0.0
  %698 = vmatpush1.msra.mxu0 0.0
  %699 = vmatprep.subr.mxu0 0.0
  %700 = vmatpush1.msra.mxu0 0.0
  %701 = vmatprep.subr.mxu0 0.0
  %702 = vmatpush1.msra.mxu0 0.0
  %703 = vmatprep.subr.mxu0 0.0
  %704 = vmatpush1.msra.mxu0 0.0
  %705 = vmatprep.subr.mxu0 0.0
  %706 = vmatpush1.msra.mxu0 0.0
  %707 = vmatprep.subr.mxu0 0.0
  %708 = vmatpush1.msra.mxu0 0.0
  %709 = vmatprep.subr.mxu0 0.0
  %710 = vmatpush1.msra.mxu0 0.0
  %711 = vmatprep.subr.mxu0 0.0
  %712 = vmatpush1.msra.mxu0 0.0
  %713 = vmatprep.subr.mxu0 0.0
  %714 = vmatpush1.msra.mxu0 0.0
  %715 = vmatprep.subr.mxu0 0.0
  %716 = vmatpush1.msra.mxu0 0.0
  %717 = vmatprep.subr.mxu0 0.0
  %718 = vmatpush1.msra.mxu0 0.0
  %719 = vmatprep.subr.mxu0 0.0
  %720 = vmatpush1.msra.mxu0 0.0
  %721 = vmatprep.subr.mxu0 0.0
  %722 = vmatpush1.msra.mxu0 0.0
  %723 = vmatprep.subr.mxu0 0.0
  %724 = vmatpush1.msra.mxu0 0.0
  %725 = vmatprep.subr.mxu0 0.0
  %726 = vmatpush1.msra.mxu0 0.0
  %727 = vmatprep.subr.mxu0 0.0
  %728 = vmatpush1.msra.mxu0 0.0
  %729 = vmatprep.subr.mxu0 0.0
  %730 = vmatpush1.msra.mxu0 0.0
  %731 = vmatprep.subr.mxu0 0.0
  %732 = vmatpush1.msra.mxu0 0.0
  %733 = vmatprep.subr.mxu0 0.0
  %734 = vmatpush1.msra.mxu0 0.0
  %735 = vmatprep.subr.mxu0 0.0
  %736 = vmatpush1.msra.mxu0 0.0
  %737 = vmatprep.subr.mxu0 0.0
  %738 = vmatpush1.msra.mxu0 0.0
  %739 = vmatprep.subr.mxu0 0.0
  %740 = vmatpush1.msra.mxu0 0.0
  %741 = vmatprep.subr.mxu0 0.0
  %742 = vmatpush1.msra.mxu0 0.0
  %743 = vmatprep.subr.mxu0 0.0
  %744 = vmatpush1.msra.mxu0 0.0
  %745 = vmatprep.mubr.f32.mxu0 0.0
  %746 = vmatmul.mubr.f32.gmra.mrb[0].mxu0 %v608
  %v747 = vpop.f32.mrb[0].mxu0
  %v748 = vadd.f32 %v604, %v747
  %v749 = vpop.f32.mrb[0].mxu0
  %v750 = vadd.f32 %v604, %v749
  %751 = vdwg.mxu0
  %v752 = vmax.f32 %v677, 0.0
  %v753 = vmax.f32 %v679, 0.0
  %v754 = vmax.f32 %v748, 0.0
  %v755 = vmax.f32 %v750, 0.0
  %756 = vrot.lane.b32.xlu0 %v752, 34
  %v757 = vpop.permute.xlu0 %756
  %758 = vrot.lane.b32.xlu0 %v753, 34
  %v759 = vpop.permute.xlu0 %758
  %760 = vrot.lane.b32.xlu0 %v754, 34
  %v761 = vpop.permute.xlu0 %760
  %762 = vrot.lane.b32.xlu0 %v755, 34
  %v763 = vpop.permute.xlu0 %762
  %vm764 = vcmp.lt.s32.totalorder %v51, 34
  %v765 = vsel %vm764, %v761, %v763
  %v766 = vsel %vm764, %v759, %v761
  %v767 = vsel %vm764, %v757, %v759
  %v768 = vsel %vm764, %v763, %v757
  %769 = vrot.lane.b32.xlu0 %v752, 32
  %v770 = vpop.permute.xlu0 %769
  %771 = vrot.lane.b32.xlu0 %v753, 32
  %v772 = vpop.permute.xlu0 %771
  %773 = vrot.lane.b32.xlu0 %v754, 32
  %v774 = vpop.permute.xlu0 %773
  %775 = vrot.lane.b32.xlu0 %v755, 32
  %v776 = vpop.permute.xlu0 %775
  %vm777 = vcmp.lt.s32.totalorder %v51, 32
  %v778 = vsel %vm777, %v774, %v776
  %v779 = vsel %vm777, %v772, %v774
  %v780 = vsel %vm777, %v770, %v772
  %v781 = vsel %vm777, %v776, %v770
  %782 = vrot.lane.b32.xlu0 %v752, 30
  %v783 = vpop.permute.xlu0 %782
  %784 = vrot.lane.b32.xlu0 %v753, 30
  %v785 = vpop.permute.xlu0 %784
  %786 = vrot.lane.b32.xlu0 %v754, 30
  %v787 = vpop.permute.xlu0 %786
  %788 = vrot.lane.b32.xlu0 %v755, 30
  %v789 = vpop.permute.xlu0 %788
  %vm790 = vcmp.lt.s32.totalorder %v51, 30
  %v791 = vsel %vm790, %v787, %v789
  %v792 = vsel %vm790, %v785, %v787
  %v793 = vsel %vm790, %v783, %v785
  %v794 = vsel %vm790, %v789, %v783
  %795 = vrot.lane.b32.xlu0 %v752, 2
  %v796 = vpop.permute.xlu0 %795
  %797 = vrot.lane.b32.xlu0 %v753, 2
  %v798 = vpop.permute.xlu0 %797
  %799 = vrot.lane.b32.xlu0 %v754, 2
  %v800 = vpop.permute.xlu0 %799
  %801 = vrot.lane.b32.xlu0 %v755, 2
  %v802 = vpop.permute.xlu0 %801
  %vm803 = vcmp.lt.s32.totalorder %v51, 2
  %v804 = vsel %vm803, %v800, %v802
  %v805 = vsel %vm803, %v798, %v800
  %v806 = vsel %vm803, %v796, %v798
  %v807 = vsel %vm803, %v802, %v796
  %808 = vrot.lane.b32.xlu0 %v752, 126
  %v809 = vpop.permute.xlu0 %808
  %810 = vrot.lane.b32.xlu0 %v753, 126
  %v811 = vpop.permute.xlu0 %810
  %812 = vrot.lane.b32.xlu0 %v754, 126
  %v813 = vpop.permute.xlu0 %812
  %814 = vrot.lane.b32.xlu0 %v755, 126
  %v815 = vpop.permute.xlu0 %814
  %vm816 = vcmp.lt.s32.totalorder %v51, 126
  %v817 = vsel %vm816, %v813, %v815
  %v818 = vsel %vm816, %v811, %v813
  %v819 = vsel %vm816, %v809, %v811
  %v820 = vsel %vm816, %v815, %v809
  %821 = vrot.lane.b32.xlu0 %v752, 98
  %v822 = vpop.permute.xlu0 %821
  %823 = vrot.lane.b32.xlu0 %v753, 98
  %v824 = vpop.permute.xlu0 %823
  %825 = vrot.lane.b32.xlu0 %v754, 98
  %v826 = vpop.permute.xlu0 %825
  %827 = vrot.lane.b32.xlu0 %v755, 98
  %v828 = vpop.permute.xlu0 %827
  %vm829 = vcmp.lt.s32.totalorder %v51, 98
  %v830 = vsel %vm829, %v826, %v828
  %v831 = vsel %vm829, %v824, %v826
  %v832 = vsel %vm829, %v822, %v824
  %v833 = vsel %vm829, %v828, %v822
  %834 = vrot.lane.b32.xlu0 %v752, 96
  %v835 = vpop.permute.xlu0 %834
  %836 = vrot.lane.b32.xlu0 %v753, 96
  %v837 = vpop.permute.xlu0 %836
  %838 = vrot.lane.b32.xlu0 %v754, 96
  %v839 = vpop.permute.xlu0 %838
  %840 = vrot.lane.b32.xlu0 %v755, 96
  %v841 = vpop.permute.xlu0 %840
  %vm842 = vcmp.lt.s32.totalorder %v51, 96
  %v843 = vsel %vm842, %v839, %v841
  %v844 = vsel %vm842, %v837, %v839
  %v845 = vsel %vm842, %v835, %v837
  %v846 = vsel %vm842, %v841, %v835
  %847 = vrot.lane.b32.xlu0 %v752, 94
  %v848 = vpop.permute.xlu0 %847
  %849 = vrot.lane.b32.xlu0 %v753, 94
  %v850 = vpop.permute.xlu0 %849
  %851 = vrot.lane.b32.xlu0 %v754, 94
  %v852 = vpop.permute.xlu0 %851
  %853 = vrot.lane.b32.xlu0 %v755, 94
  %v854 = vpop.permute.xlu0 %853
  %vm855 = vcmp.lt.s32.totalorder %v51, 94
  %v856 = vsel %vm855, %v852, %v854
  %v857 = vsel %vm855, %v850, %v852
  %v858 = vsel %vm855, %v848, %v850
  %v859 = vsel %vm855, %v854, %v848
  %v860 = vld [vmem:[%s2] sm:$0xff]
  %v861 = vld [vmem:[%s2 + $0x8] sm:$0xff]
  %v862 = vld [vmem:[%s2 + $0x10] sm:$0xff]
  %v863 = vld [vmem:[%s2 + $0x18] sm:$0xff]
  %v864 = vld [vmem:[%s2 + $0x20] sm:$0xff]
  %v865 = vld [vmem:[%s2 + $0x28] sm:$0xff]
  %v866 = vld [vmem:[%s2 + $0x30] sm:$0xff]
  %v867 = vld [vmem:[%s2 + $0x38] sm:$0xff]
  %v868 = vld [vmem:[%s2 + $0x40] sm:$0xff]
  %v869 = vld [vmem:[%s2 + $0x48] sm:$0xff]
  %v870 = vld [vmem:[%s2 + $0x50] sm:$0xff]
  %v871 = vld [vmem:[%s2 + $0x58] sm:$0xff]
  %v872 = vld [vmem:[%s2 + $0x60] sm:$0xff]
  %v873 = vld [vmem:[%s2 + $0x68] sm:$0xff]
  %v874 = vld [vmem:[%s2 + $0x70] sm:$0xff]
  %v875 = vld [vmem:[%s2 + $0x78] sm:$0xff]
  %v876 = vld [vmem:[%s2 + $0x80] sm:$0xff]
  %v877 = vld [vmem:[%s2 + $0x88] sm:$0xff]
  %v878 = vld [vmem:[%s2 + $0x90] sm:$0xff]
  %v879 = vld [vmem:[%s2 + $0x98] sm:$0xff]
  %v880 = vld [vmem:[%s2 + $0xa0] sm:$0xff]
  %v881 = vld [vmem:[%s2 + $0xa8] sm:$0xff]
  %v882 = vld [vmem:[%s2 + $0xb0] sm:$0xff]
  %v883 = vld [vmem:[%s2 + $0xb8] sm:$0xff]
  %v884 = vld [vmem:[%s2 + $0xc0] sm:$0xff]
  %v885 = vld [vmem:[%s2 + $0xc8] sm:$0xff]
  %v886 = vld [vmem:[%s2 + $0xd0] sm:$0xff]
  %v887 = vld [vmem:[%s2 + $0xd8] sm:$0xff]
  %v888 = vld [vmem:[%s2 + $0xe0] sm:$0xff]
  %v889 = vld [vmem:[%s2 + $0xe8] sm:$0xff]
  %v890 = vld [vmem:[%s2 + $0xf0] sm:$0xff]
  %v891 = vld [vmem:[%s2 + $0xf8] sm:$0xff]
  %v892 = vld [vmem:[%s2 + $0x100] sm:$0xff]
  %v893 = vld [vmem:[%s2 + $0x108] sm:$0xff]
  %v894 = vld [vmem:[%s2 + $0x110] sm:$0xff]
  %v895 = vld [vmem:[%s2 + $0x118] sm:$0xff]
  %v896 = vld [vmem:[%s2 + $0x120] sm:$0xff]
  %v897 = vld [vmem:[%s2 + $0x128] sm:$0xff]
  %v898 = vld [vmem:[%s2 + $0x130] sm:$0xff]
  %v899 = vld [vmem:[%s2 + $0x138] sm:$0xff]
  %v900 = vmul.f32 %v768, %v860
  %v901 = vmul.f32 %v767, %v861
  %v902 = vmul.f32 %v766, %v862
  %v903 = vmul.f32 %v765, %v863
  %v904 = vmul.f32 %v781, %v864
  %v905 = vmul.f32 %v780, %v865
  %v906 = vmul.f32 %v779, %v866
  %v907 = vmul.f32 %v778, %v867
  %v908 = vmul.f32 %v794, %v868
  %v909 = vmul.f32 %v793, %v869
  %v910 = vmul.f32 %v792, %v870
  %v911 = vmul.f32 %v791, %v871
  %v912 = vmul.f32 %v807, %v872
  %v913 = vmul.f32 %v806, %v873
  %v914 = vmul.f32 %v805, %v874
  %v915 = vmul.f32 %v804, %v875
  %v916 = vmul.f32 %v752, %v876
  %v917 = vmul.f32 %v753, %v877
  %v918 = vmul.f32 %v754, %v878
  %v919 = vmul.f32 %v755, %v879
  %v920 = vmul.f32 %v819, %v880
  %v921 = vmul.f32 %v818, %v881
  %v922 = vmul.f32 %v817, %v882
  %v923 = vmul.f32 %v820, %v883
  %v924 = vmul.f32 %v832, %v884
  %v925 = vmul.f32 %v831, %v885
  %v926 = vmul.f32 %v830, %v886
  %v927 = vmul.f32 %v833, %v887
  %v928 = vmul.f32 %v845, %v888
  %v929 = vmul.f32 %v844, %v889
  %v930 = vmul.f32 %v843, %v890
  %v931 = vmul.f32 %v846, %v891
  %v932 = vmul.f32 %v858, %v892
  %v933 = vmul.f32 %v857, %v893
  %v934 = vmul.f32 %v856, %v894
  %v935 = vmul.f32 %v859, %v895
  %v936 = vmul.f32 %v38, %v896
  %v937 = vmul.f32 %v39, %v897
  %v938 = vmul.f32 %v40, %v898
  %v939 = vmul.f32 %v41, %v899
  %v940 = vld [vmem:[%s9] sm:$0xff]
  %v941 = vld [vmem:[%s10] sm:$0xff]
  %943 = vset.pattern.permute.xlu0 0
  %944 = vperm.xlu0 %943, %v941
  %v945 = vpop.permute.xlu0 %944
  %vm947 = vcmask 654336
  %v949 = vsel %vm947, %v940, 0
  %951 = vmatprep.subr.mxu0 %v901
  %952 = vmatpush1.msra.mxu0 %v900
  %953 = vmatprep.subr.mxu0 %v905
  %954 = vmatpush1.msra.mxu0 %v904
  %955 = vmatprep.subr.mxu0 %v909
  %956 = vmatpush1.msra.mxu0 %v908
  %957 = vmatprep.subr.mxu0 %v913
  %958 = vmatpush1.msra.mxu0 %v912
  %959 = vmatprep.subr.mxu0 %v917
  %960 = vmatpush1.msra.mxu0 %v916
  %961 = vmatprep.subr.mxu0 %v921
  %962 = vmatpush1.msra.mxu0 %v920
  %963 = vmatprep.subr.mxu0 %v925
  %964 = vmatpush1.msra.mxu0 %v924
  %965 = vmatprep.subr.mxu0 %v929
  %966 = vmatpush1.msra.mxu0 %v928
  %967 = vmatprep.subr.mxu0 %v933
  %968 = vmatpush1.msra.mxu0 %v932
  %969 = vmatprep.subr.mxu0 %v937
  %970 = vmatpush1.msra.mxu0 %v936
  %971 = vmatprep.subr.mxu0 0.0
  %972 = vmatpush1.msra.mxu0 0.0
  %973 = vmatprep.subr.mxu0 0.0
  %974 = vmatpush1.msra.mxu0 0.0
  %975 = vmatprep.subr.mxu0 0.0
  %976 = vmatpush1.msra.mxu0 0.0
  %977 = vmatprep.subr.mxu0 0.0
  %978 = vmatpush1.msra.mxu0 0.0
  %979 = vmatprep.subr.mxu0 0.0
  %980 = vmatpush1.msra.mxu0 0.0
  %981 = vmatprep.subr.mxu0 0.0
  %982 = vmatpush1.msra.mxu0 0.0
  %983 = vmatprep.subr.mxu0 0.0
  %984 = vmatpush1.msra.mxu0 0.0
  %985 = vmatprep.subr.mxu0 0.0
  %986 = vmatpush1.msra.mxu0 0.0
  %987 = vmatprep.subr.mxu0 0.0
  %988 = vmatpush1.msra.mxu0 0.0
  %989 = vmatprep.subr.mxu0 0.0
  %990 = vmatpush1.msra.mxu0 0.0
  %991 = vmatprep.subr.mxu0 0.0
  %992 = vmatpush1.msra.mxu0 0.0
  %993 = vmatprep.subr.mxu0 0.0
  %994 = vmatpush1.msra.mxu0 0.0
  %995 = vmatprep.subr.mxu0 0.0
  %996 = vmatpush1.msra.mxu0 0.0
  %997 = vmatprep.subr.mxu0 0.0
  %998 = vmatpush1.msra.mxu0 0.0
  %999 = vmatprep.subr.mxu0 0.0
  %1000 = vmatpush1.msra.mxu0 0.0
  %1001 = vmatprep.subr.mxu0 0.0
  %1002 = vmatpush1.msra.mxu0 0.0
  %1003 = vmatprep.subr.mxu0 0.0
  %1004 = vmatpush1.msra.mxu0 0.0
  %1005 = vmatprep.subr.mxu0 0.0
  %1006 = vmatpush1.msra.mxu0 0.0
  %1007 = vmatprep.subr.mxu0 0.0
  %1008 = vmatpush1.msra.mxu0 0.0
  %1009 = vmatprep.subr.mxu0 0.0
  %1010 = vmatpush1.msra.mxu0 0.0
  %1011 = vmatprep.subr.mxu0 0.0
  %1012 = vmatpush1.msra.mxu0 0.0
  %1013 = vmatprep.subr.mxu0 0.0
  %1014 = vmatpush1.msra.mxu0 0.0
  %1015 = vmatprep.mubr.f32.mxu0 0.0
  %1016 = vmatmul.mubr.f32.gmra.mrb[0].mxu0 %v949
  %v1017 = vpop.f32.mrb[0].mxu0
  %v1018 = vadd.f32 %v945, %v1017
  %v1019 = vpop.f32.mrb[0].mxu0
  %v1020 = vadd.f32 %v945, %v1019
  %1021 = vdwg.mxu0
  %1022 = vmatprep.subr.mxu0 %v903
  %1023 = vmatpush1.msra.mxu0 %v902
  %1024 = vmatprep.subr.mxu0 %v907
  %1025 = vmatpush1.msra.mxu0 %v906
  %1026 = vmatprep.subr.mxu0 %v911
  %1027 = vmatpush1.msra.mxu0 %v910
  %1028 = vmatprep.subr.mxu0 %v915
  %1029 = vmatpush1.msra.mxu0 %v914
  %1030 = vmatprep.subr.mxu0 %v919
  %1031 = vmatpush1.msra.mxu0 %v918
  %1032 = vmatprep.subr.mxu0 %v923
  %1033 = vmatpush1.msra.mxu0 %v922
  %1034 = vmatprep.subr.mxu0 %v927
  %1035 = vmatpush1.msra.mxu0 %v926
  %1036 = vmatprep.subr.mxu0 %v931
  %1037 = vmatpush1.msra.mxu0 %v930
  %1038 = vmatprep.subr.mxu0 %v935
  %1039 = vmatpush1.msra.mxu0 %v934
  %1040 = vmatprep.subr.mxu0 %v939
  %1041 = vmatpush1.msra.mxu0 %v938
  %1042 = vmatprep.subr.mxu0 0.0
  %1043 = vmatpush1.msra.mxu0 0.0
  %1044 = vmatprep.subr.mxu0 0.0
  %1045 = vmatpush1.msra.mxu0 0.0
  %1046 = vmatprep.subr.mxu0 0.0
  %1047 = vmatpush1.msra.mxu0 0.0
  %1048 = vmatprep.subr.mxu0 0.0
  %1049 = vmatpush1.msra.mxu0 0.0
  %1050 = vmatprep.subr.mxu0 0.0
  %1051 = vmatpush1.msra.mxu0 0.0
  %1052 = vmatprep.subr.mxu0 0.0
  %1053 = vmatpush1.msra.mxu0 0.0
  %1054 = vmatprep.subr.mxu0 0.0
  %1055 = vmatpush1.msra.mxu0 0.0
  %1056 = vmatprep.subr.mxu0 0.0
  %1057 = vmatpush1.msra.mxu0 0.0
  %1058 = vmatprep.subr.mxu0 0.0
  %1059 = vmatpush1.msra.mxu0 0.0
  %1060 = vmatprep.subr.mxu0 0.0
  %1061 = vmatpush1.msra.mxu0 0.0
  %1062 = vmatprep.subr.mxu0 0.0
  %1063 = vmatpush1.msra.mxu0 0.0
  %1064 = vmatprep.subr.mxu0 0.0
  %1065 = vmatpush1.msra.mxu0 0.0
  %1066 = vmatprep.subr.mxu0 0.0
  %1067 = vmatpush1.msra.mxu0 0.0
  %1068 = vmatprep.subr.mxu0 0.0
  %1069 = vmatpush1.msra.mxu0 0.0
  %1070 = vmatprep.subr.mxu0 0.0
  %1071 = vmatpush1.msra.mxu0 0.0
  %1072 = vmatprep.subr.mxu0 0.0
  %1073 = vmatpush1.msra.mxu0 0.0
  %1074 = vmatprep.subr.mxu0 0.0
  %1075 = vmatpush1.msra.mxu0 0.0
  %1076 = vmatprep.subr.mxu0 0.0
  %1077 = vmatpush1.msra.mxu0 0.0
  %1078 = vmatprep.subr.mxu0 0.0
  %1079 = vmatpush1.msra.mxu0 0.0
  %1080 = vmatprep.subr.mxu0 0.0
  %1081 = vmatpush1.msra.mxu0 0.0
  %1082 = vmatprep.subr.mxu0 0.0
  %1083 = vmatpush1.msra.mxu0 0.0
  %1084 = vmatprep.subr.mxu0 0.0
  %1085 = vmatpush1.msra.mxu0 0.0
  %1086 = vmatprep.mubr.f32.mxu0 0.0
  %1087 = vmatmul.mubr.f32.gmra.mrb[0].mxu0 %v949
  %v1088 = vpop.f32.mrb[0].mxu0
  %v1089 = vadd.f32 %v945, %v1088
  %v1090 = vpop.f32.mrb[0].mxu0
  %v1091 = vadd.f32 %v945, %v1090
  %1092 = vdwg.mxu0
  %v1093 = vmax.f32 %v1018, 0.0
  %v1094 = vmax.f32 %v1020, 0.0
  %v1095 = vmax.f32 %v1089, 0.0
  %v1096 = vmax.f32 %v1091, 0.0
  %1097 = vst [vmem:[%s11] sm:$0xff] %v1093
  %1098 = vst [vmem:[%s11 + $0x8] sm:$0xff] %v1094
  %1099 = vst [vmem:[%s11 + $0x10] sm:$0xff] %v1095
  %1100 = vst [vmem:[%s11 + $0x18] sm:$0xff] %v1096
  // Predicated region
  $region46: #{skipblock_pallas.1} parent=0 // pred_check
    _
  $region47: #{skipblock_pallas.1} parent=0 // pred_check_branch
    %1102 = sbr.rel (0) target = $region49
  $region48: #{skipblock_pallas.1} parent=0 // pred_region
    _
  $region49: #{skipblock_pallas.1} parent=0 // pred_fallthru
    _
  // Predicated region
  $region50: #{skipblock_pallas.1} parent=0 // pred_check
    _
  $region51: #{skipblock_pallas.1} parent=0 // pred_check_branch
    %1104 = sbr.rel (0) target = $region53
  $region52: #{skipblock_pallas.1} parent=0 // pred_region
    _
  $region53: #{skipblock_pallas.1} parent=0 // pred_fallthru
    _

</llo_original>
